<compile_context>
chip_gen: v7x
topology: tpu7x:2x2x1
jax: 0.10.0
libtpu: 0.0.40
codegen_flags: <defaults>
</compile_context>

<pallas_src>
import math

import jax
import jax.numpy as jnp
from jax.experimental import pallas as pl
from jax.experimental.pallas import tpu as pltpu


def _domain_adaptation_kernel(
    q_ref, k_ref, v_ref,          # (Bblk, N, D) each
    w1_ref, b1_ref,               # fused first layer:  (D, 2H), (1, 2H)
    w2_ref, b2_ref,               # fused, padded second layer: (2H, OUTP), (1, OUTP)
    out_ref,                      # (Bblk, N, OUTP) lane-dense slab = [dom_q | dom_k | 0pad]
):
    bblk, n, d = q_ref.shape

    # Diagonal damping mask computed in-kernel (no O(D^2) HBM operand):
    # scale = 1 - eye(D)/sqrt(D), so exp(S*scale) == exp(S - diag(S)/sqrt(D)).
    row = jax.lax.broadcasted_iota(jnp.int32, (d, d), 0)
    col = jax.lax.broadcasted_iota(jnp.int32, (d, d), 1)
    scale = jnp.where(row == col,
                      jnp.float32(1.0 - 1.0 / math.sqrt(d)),
                      jnp.float32(1.0))                           # (D, D)

    # Per-instance attention, unrolled (Bblk is small and static).  Contraction
    # dims are chosen so q/k/v are never materially transposed before the MXU.
    av_rows = []
    for b in range(bblk):
        qb = q_ref[b]                                             # (N, D)
        kb = k_ref[b]
        vb = v_ref[b]

        # S = Q^T @ K : contract over rows (dim 0 of both operands).
        s = jax.lax.dot_general(
            qb, kb, dimension_numbers=(((0,), (0,)), ((), ())),
            preferred_element_type=jnp.float32)                   # (D, D)

        logit = jnp.exp(s * scale)

        # softmax over last axis (numerically stabilized); denominator
        # reciprocal on the EUP (approx) keeps it off the VALU critical path.
        m = jnp.max(logit, axis=-1, keepdims=True)
        e = jnp.exp(logit - m)
        attn = e * pl.reciprocal(jnp.sum(e, axis=-1, keepdims=True), approx=True)

        # attn_values = (attn @ V^T)^T : contract over features (dim 1 of both).
        av_b = jax.lax.dot_general(
            vb, attn.astype(vb.dtype),
            dimension_numbers=(((1,), (1,)), ((), ())),
            preferred_element_type=jnp.float32)                   # (N, D)
        av_rows.append(av_b)

    # Fuse the MLP across instances: sublane-major merge to (Bblk*N, D) so the
    # two MLP matmuls run once with full row occupancy, and the output store is
    # one large lane-dense slab.
    w_dtype = w1_ref.dtype
    avf = jnp.concatenate(av_rows, axis=0).astype(w_dtype)        # (Bblk*N, D)
    h = jnp.maximum(
        jnp.dot(avf, w1_ref[...], preferred_element_type=jnp.float32) + b1_ref[...],
        0.0)                                                      # (Bblk*N, 2H)
    out = (jnp.dot(h.astype(w_dtype), w2_ref[...],
                   preferred_element_type=jnp.float32) + b2_ref[...])  # (Bblk*N, OUTP)
    out_ref[...] = out.reshape(bblk, n, out_ref.shape[-1]).astype(out_ref.dtype)


def domain_adaptation_forward(query, key, value, params, *, block_b=None,
                              operand_dtype=jnp.float32):
    """Forward of DomainAdaptation.

    query/key/value: (N, D) for a single module call, or (B, N, D) for a batch
    of independent calls (shared module parameters).
    params = (wq1, bq1, wq2, bq2, wk1, bk1, wk2, bk2); biases shaped (1, dim).
    block_b: instances per grid step (default: whole batch -> grid=(1,)).
    operand_dtype: dtype of q/k/v and weights fed to the MXU (f32 or bf16);
                   accumulation stays f32.
    Returns (dom_query, dom_key), each (N, D) (or (B, N, D) if batched).
    """
    wq1, bq1, wq2, bq2, wk1, bk1, wk2, bk2 = params

    squeeze = query.ndim == 2
    if squeeze:
        query, key, value = query[None], key[None], value[None]
    B, N, D = query.shape
    H = wq1.shape[1]

    if block_b is None:
        block_b = B                      # one fat grid step amortizes step overhead
    assert B % block_b == 0, "batch must be divisible by block_b"
    num_blocks = B // block_b

    # --- fuse the two MLP heads into lane-dense parameters (done once, outside the kernel) ---
    w1f = jnp.concatenate([wq1, wk1], axis=1)                     # (D, 2H)
    b1f = jnp.concatenate([bq1, bk1], axis=1)                     # (1, 2H)
    zeros = jnp.zeros((H, D), dtype=wq2.dtype)
    w2f = jnp.concatenate(
        [jnp.concatenate([wq2, zeros], axis=1),
         jnp.concatenate([zeros, wk2], axis=1)], axis=0)          # (2H, 2D) block-diagonal
    b2f = jnp.concatenate([bq2, bk2], axis=1)                     # (1, 2D)
    # TODO(synk): if H or D ever exceed one MXU tile (>128), split the second
    # layer into two matmuls instead of this zero-padded block-diagonal.

    # Lane-dense output: pad the second layer to a multiple of 128 lanes so the
    # final store is an unmasked full-width vst, then slice in the wrapper.
    out_w = 2 * D
    out_pad = ((out_w + 127) // 128) * 128
    if out_pad != out_w:
        w2f = jnp.pad(w2f, ((0, 0), (0, out_pad - out_w)))
        b2f = jnp.pad(b2f, ((0, 0), (0, out_pad - out_w)))

    # MXU operands (optionally bf16 on v6e/v7x); biases stay f32.
    qx = query.astype(operand_dtype)
    kx = key.astype(operand_dtype)
    vx = value.astype(operand_dtype)
    w1f = w1f.astype(operand_dtype)
    w2f = w2f.astype(operand_dtype)
    b1f = b1f.astype(jnp.float32)
    b2f = b2f.astype(jnp.float32)

    qkv_spec = pl.BlockSpec((block_b, N, D), lambda b: (b, 0, 0))

    def resident(shape):
        nd = len(shape)
        return pl.BlockSpec(shape, lambda b, _nd=nd: (0,) * _nd)

    itemsize = jnp.dtype(operand_dtype).itemsize
    cost = pl.CostEstimate(
        flops=2 * B * N * (2 * D * D + 2 * D * H + 2 * H * out_pad),
        transcendentals=2 * B * D * D,
        bytes_accessed=(3 * B * N * D * itemsize
                        + (D * 2 * H + 2 * H * out_pad) * itemsize
                        + (2 * H + out_pad) * 4
                        + B * N * out_pad * 4),
    )

    out = pl.pallas_call(
        _domain_adaptation_kernel,
        out_shape=jax.ShapeDtypeStruct((B, N, out_pad), jnp.float32),
        grid=(num_blocks,),
        in_specs=[
            qkv_spec, qkv_spec, qkv_spec,
            resident(w1f.shape), resident(b1f.shape),
            resident(w2f.shape), resident(b2f.shape),
        ],
        out_specs=pl.BlockSpec((block_b, N, out_pad), lambda b: (b, 0, 0)),
        compiler_params=pltpu.CompilerParams(dimension_semantics=("parallel",)),
        cost_estimate=cost,
    )(qx, kx, vx, w1f, b1f, w2f, b2f)

    dom_q, dom_k = out[..., :D], out[..., D:2 * D]
    if squeeze:
        dom_q, dom_k = dom_q[0], dom_k[0]
    return dom_q, dom_k


def _reference_forward(query, key, value, params):
    """Pure-JAX reference for a single (N, D) instance (mirrors the PyTorch module)."""
    wq1, bq1, wq2, bq2, wk1, bk1, wk2, bk2 = params
    d = query.shape[-1]
    s = query.T @ key
    logit = jnp.exp(s - s * jnp.eye(d, dtype=s.dtype) / math.sqrt(d))
    attn = jax.nn.softmax(logit, axis=-1)
    av = (attn @ value.T).T
    dq = jnp.maximum(av @ wq1 + bq1, 0.0) @ wq2 + bq2
    dk = jnp.maximum(av @ wk1 + bk1, 0.0) @ wk2 + bk2
    return dq, dk


if __name__ == "__main__":
    N, FEAT_DIM, HIDDEN_DIM, BATCH = 8, 32, 64, 4

    key0 = jax.random.PRNGKey(0)
    keys = jax.random.split(key0, 11)

    q_b = jax.random.normal(keys[0], (BATCH, N, FEAT_DIM), dtype=jnp.float32) * 0.5
    k_b = jax.random.normal(keys[1], (BATCH, N, FEAT_DIM), dtype=jnp.float32) * 0.5
    v_b = jax.random.normal(keys[2], (BATCH, N, FEAT_DIM), dtype=jnp.float32) * 0.5

    def _linear_init(k, fan_in, shape):
        bound = 1.0 / math.sqrt(fan_in)
        return jax.random.uniform(k, shape, jnp.float32, -bound, bound)

    # MLP "q" head parameters
    wq1 = _linear_init(keys[3], FEAT_DIM, (FEAT_DIM, HIDDEN_DIM))
    bq1 = _linear_init(keys[4], FEAT_DIM, (1, HIDDEN_DIM))
    wq2 = _linear_init(keys[5], HIDDEN_DIM, (HIDDEN_DIM, FEAT_DIM))
    bq2 = _linear_init(keys[6], HIDDEN_DIM, (1, FEAT_DIM))
    # MLP "k" head parameters
    wk1 = _linear_init(keys[7], FEAT_DIM, (FEAT_DIM, HIDDEN_DIM))
    bk1 = _linear_init(keys[8], FEAT_DIM, (1, HIDDEN_DIM))
    wk2 = _linear_init(keys[9], HIDDEN_DIM, (HIDDEN_DIM, FEAT_DIM))
    bk2 = _linear_init(keys[10], HIDDEN_DIM, (1, FEAT_DIM))

    params = (wq1, bq1, wq2, bq2, wk1, bk1, wk2, bk2)

    # Batched forward: all B instances in one grid step (f32 MXU operands).
    dom_q, dom_k = domain_adaptation_forward(q_b, k_b, v_b, params)
    jax.block_until_ready((dom_q, dom_k))

    for b in range(BATCH):
        ref_q, ref_k = _reference_forward(q_b[b], k_b[b], v_b[b], params)
        assert jnp.allclose(dom_q[b], ref_q, atol=5e-3, rtol=5e-3)
        assert jnp.allclose(dom_k[b], ref_k, atol=5e-3, rtol=5e-3)

    # Single-instance path (exact module signature: 2-D query/key/value).
    sq, sk = domain_adaptation_forward(q_b[0], k_b[0], v_b[0], params)
    jax.block_until_ready((sq, sk))
    assert jnp.allclose(sq, dom_q[0], atol=1e-5, rtol=1e-5)
    assert jnp.allclose(sk, dom_k[0], atol=1e-5, rtol=1e-5)

    # bf16 MXU operands (v6e/v7x path), f32 accumulation -- relaxed tolerance.
    bq16, bk16 = domain_adaptation_forward(q_b, k_b, v_b, params,
                                           operand_dtype=jnp.bfloat16)
    jax.block_until_ready((bq16, bk16))
    assert jnp.allclose(bq16, dom_q, atol=3e-2, rtol=3e-2)
    assert jnp.allclose(bk16, dom_k, atol=3e-2, rtol=3e-2)

    print("KERNEL_OK")
</pallas_src>

<mosaic_0001>
module attributes {stable_mosaic.version = 11 : i64} {
  func.func @_domain_adaptation_kernel(%arg0: i32, %arg1: memref<4x8x32xf32, #tpu.memory_space<vmem>>, %arg2: memref<4x8x32xf32, #tpu.memory_space<vmem>>, %arg3: memref<4x8x32xf32, #tpu.memory_space<vmem>>, %arg4: memref<32x128xf32, #tpu.memory_space<vmem>>, %arg5: memref<1x128xf32, #tpu.memory_space<vmem>>, %arg6: memref<128x128xf32, #tpu.memory_space<vmem>>, %arg7: memref<1x128xf32, #tpu.memory_space<vmem>>, %arg8: memref<4x8x128xf32, #tpu.memory_space<vmem>>) attributes {dimension_semantics = [#tpu.dimension_semantics<parallel>], iteration_bounds = array<i64: 1>, scalar_prefetch = 0 : i64, scratch_operands = 0 : i64, tpu.core_type = #tpu.core_type<tc>, window_params = [{transform_indices = @transform_0, window_bounds = array<i64: 4, 8, 32>}, {transform_indices = @transform_1, window_bounds = array<i64: 4, 8, 32>}, {transform_indices = @transform_2, window_bounds = array<i64: 4, 8, 32>}, {pipeline_mode = #tpu.pipeline_mode<synchronous>, transform_indices = @transform_3, window_bounds = array<i64: 32, 128>}, {pipeline_mode = #tpu.pipeline_mode<synchronous>, transform_indices = @transform_4, window_bounds = array<i64: 1, 128>}, {pipeline_mode = #tpu.pipeline_mode<synchronous>, transform_indices = @transform_5, window_bounds = array<i64: 128, 128>}, {pipeline_mode = #tpu.pipeline_mode<synchronous>, transform_indices = @transform_6, window_bounds = array<i64: 1, 128>}, {transform_indices = @transform_7, window_bounds = array<i64: 4, 8, 128>}]} {
    %0 = tpu.iota {dimensions = array<i32: 0>} : vector<32x32xi32>
    %1 = tpu.iota {dimensions = array<i32: 1>} : vector<32x32xi32>
    %2 = arith.cmpi eq, %0, %1 : vector<32x32xi32>
    %cst = arith.constant 0.823223292 : f32
    %cst_0 = arith.constant 1.000000e+00 : f32
    %3 = vector.broadcast %cst : f32 to vector<32x32xf32>
    %4 = vector.broadcast %cst_0 : f32 to vector<32x32xf32>
    %5 = arith.select %2, %3, %4 : vector<32x32xi1>, vector<32x32xf32>
    %c0 = arith.constant 0 : index
    %c0_1 = arith.constant 0 : index
    %c0_2 = arith.constant 0 : index
    %6 = vector.load %arg1[%c0, %c0_1, %c0_2] : memref<4x8x32xf32, #tpu.memory_space<vmem>>, vector<1x8x32xf32>
    %7 = vector.shape_cast %6 : vector<1x8x32xf32> to vector<8x32xf32>
    %c0_3 = arith.constant 0 : index
    %c0_4 = arith.constant 0 : index
    %c0_5 = arith.constant 0 : index
    %8 = vector.load %arg2[%c0_3, %c0_4, %c0_5] : memref<4x8x32xf32, #tpu.memory_space<vmem>>, vector<1x8x32xf32>
    %9 = vector.shape_cast %8 : vector<1x8x32xf32> to vector<8x32xf32>
    %c0_6 = arith.constant 0 : index
    %c0_7 = arith.constant 0 : index
    %c0_8 = arith.constant 0 : index
    %10 = vector.load %arg3[%c0_6, %c0_7, %c0_8] : memref<4x8x32xf32, #tpu.memory_space<vmem>>, vector<1x8x32xf32>
    %11 = vector.shape_cast %10 : vector<1x8x32xf32> to vector<8x32xf32>
    %cst_9 = arith.constant dense<0.000000e+00> : vector<32x32xf32>
    %12 = tpu.matmul %7, %9, %cst_9 {dimension_numbers = #tpu.dot_dimension_numbers<[0], [0], [1], [1], [0, 1, 1, 1], [], []>} : vector<8x32xf32>, vector<8x32xf32>, vector<32x32xf32> -> vector<32x32xf32>
    %13 = arith.mulf %12, %5 : vector<32x32xf32>
    %14 = math.exp %13 : vector<32x32xf32>
    %cst_10 = arith.constant dense<0xFF800000> : vector<32xf32>
    %15 = vector.multi_reduction <maximumf>, %14, %cst_10 [1] : vector<32x32xf32> to vector<32xf32>
    %16 = vector.shape_cast %15 : vector<32xf32> to vector<32x1xf32>
    %17 = vector.broadcast %16 : vector<32x1xf32> to vector<32x32xf32>
    %18 = arith.subf %14, %17 : vector<32x32xf32>
    %19 = math.exp %18 : vector<32x32xf32>
    %cst_11 = arith.constant dense<0.000000e+00> : vector<32xf32>
    %20 = vector.multi_reduction <add>, %19, %cst_11 [1] : vector<32x32xf32> to vector<32xf32>
    %21 = vector.shape_cast %20 : vector<32xf32> to vector<32x1xf32>
    %22 = tpu.reciprocal %21 {approx = true} : vector<32x1xf32> -> vector<32x1xf32>
    %23 = vector.broadcast %22 : vector<32x1xf32> to vector<32x32xf32>
    %24 = arith.mulf %19, %23 : vector<32x32xf32>
    %cst_12 = arith.constant dense<0.000000e+00> : vector<8x32xf32>
    %25 = tpu.matmul %11, %24, %cst_12 {dimension_numbers = #tpu.dot_dimension_numbers<[1], [1], [0], [0], [0, 0, 1, 0], [], []>} : vector<8x32xf32>, vector<32x32xf32>, vector<8x32xf32> -> vector<8x32xf32>
    %c1 = arith.constant 1 : index
    %c0_13 = arith.constant 0 : index
    %c0_14 = arith.constant 0 : index
    %26 = vector.load %arg1[%c1, %c0_13, %c0_14] : memref<4x8x32xf32, #tpu.memory_space<vmem>>, vector<1x8x32xf32>
    %27 = vector.shape_cast %26 : vector<1x8x32xf32> to vector<8x32xf32>
    %c1_15 = arith.constant 1 : index
    %c0_16 = arith.constant 0 : index
    %c0_17 = arith.constant 0 : index
    %28 = vector.load %arg2[%c1_15, %c0_16, %c0_17] : memref<4x8x32xf32, #tpu.memory_space<vmem>>, vector<1x8x32xf32>
    %29 = vector.shape_cast %28 : vector<1x8x32xf32> to vector<8x32xf32>
    %c1_18 = arith.constant 1 : index
    %c0_19 = arith.constant 0 : index
    %c0_20 = arith.constant 0 : index
    %30 = vector.load %arg3[%c1_18, %c0_19, %c0_20] : memref<4x8x32xf32, #tpu.memory_space<vmem>>, vector<1x8x32xf32>
    %31 = vector.shape_cast %30 : vector<1x8x32xf32> to vector<8x32xf32>
    %cst_21 = arith.constant dense<0.000000e+00> : vector<32x32xf32>
    %32 = tpu.matmul %27, %29, %cst_21 {dimension_numbers = #tpu.dot_dimension_numbers<[0], [0], [1], [1], [0, 1, 1, 1], [], []>} : vector<8x32xf32>, vector<8x32xf32>, vector<32x32xf32> -> vector<32x32xf32>
    %33 = arith.mulf %32, %5 : vector<32x32xf32>
    %34 = math.exp %33 : vector<32x32xf32>
    %cst_22 = arith.constant dense<0xFF800000> : vector<32xf32>
    %35 = vector.multi_reduction <maximumf>, %34, %cst_22 [1] : vector<32x32xf32> to vector<32xf32>
    %36 = vector.shape_cast %35 : vector<32xf32> to vector<32x1xf32>
    %37 = vector.broadcast %36 : vector<32x1xf32> to vector<32x32xf32>
    %38 = arith.subf %34, %37 : vector<32x32xf32>
    %39 = math.exp %38 : vector<32x32xf32>
    %cst_23 = arith.constant dense<0.000000e+00> : vector<32xf32>
    %40 = vector.multi_reduction <add>, %39, %cst_23 [1] : vector<32x32xf32> to vector<32xf32>
    %41 = vector.shape_cast %40 : vector<32xf32> to vector<32x1xf32>
    %42 = tpu.reciprocal %41 {approx = true} : vector<32x1xf32> -> vector<32x1xf32>
    %43 = vector.broadcast %42 : vector<32x1xf32> to vector<32x32xf32>
    %44 = arith.mulf %39, %43 : vector<32x32xf32>
    %cst_24 = arith.constant dense<0.000000e+00> : vector<8x32xf32>
    %45 = tpu.matmul %31, %44, %cst_24 {dimension_numbers = #tpu.dot_dimension_numbers<[1], [1], [0], [0], [0, 0, 1, 0], [], []>} : vector<8x32xf32>, vector<32x32xf32>, vector<8x32xf32> -> vector<8x32xf32>
    %c2 = arith.constant 2 : index
    %c0_25 = arith.constant 0 : index
    %c0_26 = arith.constant 0 : index
    %46 = vector.load %arg1[%c2, %c0_25, %c0_26] : memref<4x8x32xf32, #tpu.memory_space<vmem>>, vector<1x8x32xf32>
    %47 = vector.shape_cast %46 : vector<1x8x32xf32> to vector<8x32xf32>
    %c2_27 = arith.constant 2 : index
    %c0_28 = arith.constant 0 : index
    %c0_29 = arith.constant 0 : index
    %48 = vector.load %arg2[%c2_27, %c0_28, %c0_29] : memref<4x8x32xf32, #tpu.memory_space<vmem>>, vector<1x8x32xf32>
    %49 = vector.shape_cast %48 : vector<1x8x32xf32> to vector<8x32xf32>
    %c2_30 = arith.constant 2 : index
    %c0_31 = arith.constant 0 : index
    %c0_32 = arith.constant 0 : index
    %50 = vector.load %arg3[%c2_30, %c0_31, %c0_32] : memref<4x8x32xf32, #tpu.memory_space<vmem>>, vector<1x8x32xf32>
    %51 = vector.shape_cast %50 : vector<1x8x32xf32> to vector<8x32xf32>
    %cst_33 = arith.constant dense<0.000000e+00> : vector<32x32xf32>
    %52 = tpu.matmul %47, %49, %cst_33 {dimension_numbers = #tpu.dot_dimension_numbers<[0], [0], [1], [1], [0, 1, 1, 1], [], []>} : vector<8x32xf32>, vector<8x32xf32>, vector<32x32xf32> -> vector<32x32xf32>
    %53 = arith.mulf %52, %5 : vector<32x32xf32>
    %54 = math.exp %53 : vector<32x32xf32>
    %cst_34 = arith.constant dense<0xFF800000> : vector<32xf32>
    %55 = vector.multi_reduction <maximumf>, %54, %cst_34 [1] : vector<32x32xf32> to vector<32xf32>
    %56 = vector.shape_cast %55 : vector<32xf32> to vector<32x1xf32>
    %57 = vector.broadcast %56 : vector<32x1xf32> to vector<32x32xf32>
    %58 = arith.subf %54, %57 : vector<32x32xf32>
    %59 = math.exp %58 : vector<32x32xf32>
    %cst_35 = arith.constant dense<0.000000e+00> : vector<32xf32>
    %60 = vector.multi_reduction <add>, %59, %cst_35 [1] : vector<32x32xf32> to vector<32xf32>
    %61 = vector.shape_cast %60 : vector<32xf32> to vector<32x1xf32>
    %62 = tpu.reciprocal %61 {approx = true} : vector<32x1xf32> -> vector<32x1xf32>
    %63 = vector.broadcast %62 : vector<32x1xf32> to vector<32x32xf32>
    %64 = arith.mulf %59, %63 : vector<32x32xf32>
    %cst_36 = arith.constant dense<0.000000e+00> : vector<8x32xf32>
    %65 = tpu.matmul %51, %64, %cst_36 {dimension_numbers = #tpu.dot_dimension_numbers<[1], [1], [0], [0], [0, 0, 1, 0], [], []>} : vector<8x32xf32>, vector<32x32xf32>, vector<8x32xf32> -> vector<8x32xf32>
    %c3 = arith.constant 3 : index
    %c0_37 = arith.constant 0 : index
    %c0_38 = arith.constant 0 : index
    %66 = vector.load %arg1[%c3, %c0_37, %c0_38] : memref<4x8x32xf32, #tpu.memory_space<vmem>>, vector<1x8x32xf32>
    %67 = vector.shape_cast %66 : vector<1x8x32xf32> to vector<8x32xf32>
    %c3_39 = arith.constant 3 : index
    %c0_40 = arith.constant 0 : index
    %c0_41 = arith.constant 0 : index
    %68 = vector.load %arg2[%c3_39, %c0_40, %c0_41] : memref<4x8x32xf32, #tpu.memory_space<vmem>>, vector<1x8x32xf32>
    %69 = vector.shape_cast %68 : vector<1x8x32xf32> to vector<8x32xf32>
    %c3_42 = arith.constant 3 : index
    %c0_43 = arith.constant 0 : index
    %c0_44 = arith.constant 0 : index
    %70 = vector.load %arg3[%c3_42, %c0_43, %c0_44] : memref<4x8x32xf32, #tpu.memory_space<vmem>>, vector<1x8x32xf32>
    %71 = vector.shape_cast %70 : vector<1x8x32xf32> to vector<8x32xf32>
    %cst_45 = arith.constant dense<0.000000e+00> : vector<32x32xf32>
    %72 = tpu.matmul %67, %69, %cst_45 {dimension_numbers = #tpu.dot_dimension_numbers<[0], [0], [1], [1], [0, 1, 1, 1], [], []>} : vector<8x32xf32>, vector<8x32xf32>, vector<32x32xf32> -> vector<32x32xf32>
    %73 = arith.mulf %72, %5 : vector<32x32xf32>
    %74 = math.exp %73 : vector<32x32xf32>
    %cst_46 = arith.constant dense<0xFF800000> : vector<32xf32>
    %75 = vector.multi_reduction <maximumf>, %74, %cst_46 [1] : vector<32x32xf32> to vector<32xf32>
    %76 = vector.shape_cast %75 : vector<32xf32> to vector<32x1xf32>
    %77 = vector.broadcast %76 : vector<32x1xf32> to vector<32x32xf32>
    %78 = arith.subf %74, %77 : vector<32x32xf32>
    %79 = math.exp %78 : vector<32x32xf32>
    %cst_47 = arith.constant dense<0.000000e+00> : vector<32xf32>
    %80 = vector.multi_reduction <add>, %79, %cst_47 [1] : vector<32x32xf32> to vector<32xf32>
    %81 = vector.shape_cast %80 : vector<32xf32> to vector<32x1xf32>
    %82 = tpu.reciprocal %81 {approx = true} : vector<32x1xf32> -> vector<32x1xf32>
    %83 = vector.broadcast %82 : vector<32x1xf32> to vector<32x32xf32>
    %84 = arith.mulf %79, %83 : vector<32x32xf32>
    %cst_48 = arith.constant dense<0.000000e+00> : vector<8x32xf32>
    %85 = tpu.matmul %71, %84, %cst_48 {dimension_numbers = #tpu.dot_dimension_numbers<[1], [1], [0], [0], [0, 0, 1, 0], [], []>} : vector<8x32xf32>, vector<32x32xf32>, vector<8x32xf32> -> vector<8x32xf32>
    %86 = tpu.concatenate %25, %45, %65, %85 in 0 : vector<8x32xf32>, vector<8x32xf32>, vector<8x32xf32>, vector<8x32xf32> -> vector<32x32xf32>
    %c0_49 = arith.constant 0 : index
    %c0_50 = arith.constant 0 : index
    %87 = vector.load %arg4[%c0_49, %c0_50] : memref<32x128xf32, #tpu.memory_space<vmem>>, vector<32x128xf32>
    %cst_51 = arith.constant dense<0.000000e+00> : vector<32x128xf32>
    %88 = tpu.matmul %86, %87, %cst_51 {dimension_numbers = #tpu.dot_dimension_numbers<[1], [0], [0], [1], [0, 0, 1, 1], [], []>} : vector<32x32xf32>, vector<32x128xf32>, vector<32x128xf32> -> vector<32x128xf32>
    %c0_52 = arith.constant 0 : index
    %c0_53 = arith.constant 0 : index
    %89 = vector.load %arg5[%c0_52, %c0_53] : memref<1x128xf32, #tpu.memory_space<vmem>>, vector<1x128xf32>
    %90 = vector.broadcast %89 : vector<1x128xf32> to vector<32x128xf32>
    %91 = arith.addf %88, %90 : vector<32x128xf32>
    %cst_54 = arith.constant 0.000000e+00 : f32
    %92 = vector.broadcast %cst_54 : f32 to vector<32x128xf32>
    %93 = arith.maximumf %91, %92 : vector<32x128xf32>
    %c0_55 = arith.constant 0 : index
    %c0_56 = arith.constant 0 : index
    %94 = vector.load %arg6[%c0_55, %c0_56] : memref<128x128xf32, #tpu.memory_space<vmem>>, vector<128x128xf32>
    %cst_57 = arith.constant dense<0.000000e+00> : vector<32x128xf32>
    %95 = tpu.matmul %93, %94, %cst_57 {dimension_numbers = #tpu.dot_dimension_numbers<[1], [0], [0], [1], [0, 0, 1, 1], [], []>} : vector<32x128xf32>, vector<128x128xf32>, vector<32x128xf32> -> vector<32x128xf32>
    %c0_58 = arith.constant 0 : index
    %c0_59 = arith.constant 0 : index
    %96 = vector.load %arg7[%c0_58, %c0_59] : memref<1x128xf32, #tpu.memory_space<vmem>>, vector<1x128xf32>
    %97 = vector.broadcast %96 : vector<1x128xf32> to vector<32x128xf32>
    %98 = arith.addf %95, %97 : vector<32x128xf32>
    %99 = vector.shape_cast %98 : vector<32x128xf32> to vector<4x8x128xf32>
    %c0_60 = arith.constant 0 : index
    %c0_61 = arith.constant 0 : index
    %c0_62 = arith.constant 0 : index
    %100 = vector.load %arg8[%c0_60, %c0_61, %c0_62] : memref<4x8x128xf32, #tpu.memory_space<vmem>>, vector<4x8x128xf32>
    tpu.vector_store %arg8[%c0_60, %c0_61, %c0_62], %99 {strides = array<i32>} : memref<4x8x128xf32, #tpu.memory_space<vmem>>, vector<4x8x128xf32>,
    return
  }
  func.func @transform_0(%arg0: i32) -> (i32, i32, i32) {
    %c0_i32 = arith.constant 0 : i32
    %c0_i32_0 = arith.constant 0 : i32
    %c0_i32_1 = arith.constant 0 : i32
    return %arg0, %c0_i32, %c0_i32_0 : i32, i32, i32
  }
  func.func @transform_1(%arg0: i32) -> (i32, i32, i32) {
    %c0_i32 = arith.constant 0 : i32
    %c0_i32_0 = arith.constant 0 : i32
    %c0_i32_1 = arith.constant 0 : i32
    return %arg0, %c0_i32, %c0_i32_0 : i32, i32, i32
  }
  func.func @transform_2(%arg0: i32) -> (i32, i32, i32) {
    %c0_i32 = arith.constant 0 : i32
    %c0_i32_0 = arith.constant 0 : i32
    %c0_i32_1 = arith.constant 0 : i32
    return %arg0, %c0_i32, %c0_i32_0 : i32, i32, i32
  }
  func.func @transform_3(%arg0: i32) -> (i32, i32) {
    %c0_i32 = arith.constant 0 : i32
    %c0_i32_0 = arith.constant 0 : i32
    %c0_i32_1 = arith.constant 0 : i32
    return %c0_i32, %c0_i32_0 : i32, i32
  }
  func.func @transform_4(%arg0: i32) -> (i32, i32) {
    %c0_i32 = arith.constant 0 : i32
    %c0_i32_0 = arith.constant 0 : i32
    %c0_i32_1 = arith.constant 0 : i32
    return %c0_i32, %c0_i32_0 : i32, i32
  }
  func.func @transform_5(%arg0: i32) -> (i32, i32) {
    %c0_i32 = arith.constant 0 : i32
    %c0_i32_0 = arith.constant 0 : i32
    %c0_i32_1 = arith.constant 0 : i32
    return %c0_i32, %c0_i32_0 : i32, i32
  }
  func.func @transform_6(%arg0: i32) -> (i32, i32) {
    %c0_i32 = arith.constant 0 : i32
    %c0_i32_0 = arith.constant 0 : i32
    %c0_i32_1 = arith.constant 0 : i32
    return %c0_i32, %c0_i32_0 : i32, i32
  }
  func.func @transform_7(%arg0: i32) -> (i32, i32, i32) {
    %c0_i32 = arith.constant 0 : i32
    %c0_i32_0 = arith.constant 0 : i32
    %c0_i32_1 = arith.constant 0 : i32
    return %arg0, %c0_i32, %c0_i32_0 : i32, i32, i32
  }
}

</mosaic_0001>

<llo_original>
// kernel: tpu_custom_call.1
$region0: #{tpu_custom_call.1}
  #allocation0 [shape = 'u32[]', space=smem, size = 0x4, offset = 0x4, fixed_abs, tag = 'smem constant byte address 0x4 - core index']
  #allocation1 [shape = 'u32[144,128]{1,0:T(1,128)}', space=vmem, size = 0x12000, scoped, tag = 'internal scratch']
  %s0 = inlined_call_operand.hbm [shape: f32[4,8,32], index: 0, kind: input, shape index: {}]
  %s1 = inlined_call_operand.hbm [shape: f32[4,8,32], index: 1, kind: input, shape index: {}]
  %s2 = inlined_call_operand.hbm [shape: f32[4,8,32], index: 2, kind: input, shape index: {}]
  %s3 = inlined_call_operand.hbm [shape: f32[32,128], index: 3, kind: input, shape index: {}]
  %s4 = inlined_call_operand.vmem [shape: f32[1,128], index: 4, kind: input, shape index: {}]
  %s5 = inlined_call_operand.hbm [shape: f32[128,128], index: 5, kind: input, shape index: {}]
  %s6 = inlined_call_operand.vmem [shape: f32[1,128], index: 6, kind: input, shape index: {}]
  %s7 = inlined_call_operand.hbm [shape: f32[4,8,128], index: 7, kind: output, shape index: {}]
  %s8 = sld [smem:[#allocation0]]
  $region58: #{tpu_custom_call.1} parent=0
    _
  %s10 = ssub.s32 1, %s8
  %s11 = scalar_select 0, %s10, %s8
  $region1: #{tpu_custom_call.1} parent=0
    #allocation2 [shape = 'u8[16384]{0}', space=vmem, size = 0x4000, scoped, tag = 'input window, operand 0, single buffered']
    #allocation3 [shape = 's32[1]{0}', space=sflag, size = 0x4, scoped, tag = 'scoped memory for tpu_custom_call.1']
    #allocation4 [shape = 's32[1]{0}', space=sflag, size = 0x4, scoped, tag = 'scoped memory for tpu_custom_call.1']
    #allocation5 [shape = 'u8[16384]{0}', space=vmem, size = 0x4000, scoped, tag = 'input window, operand 1, single buffered']
    #allocation6 [shape = 's32[1]{0}', space=sflag, size = 0x4, scoped, tag = 'scoped memory for tpu_custom_call.1']
    #allocation7 [shape = 'u8[16384]{0}', space=vmem, size = 0x4000, scoped, tag = 'input window, operand 2, single buffered']
    #allocation8 [shape = 'u8[16384]{0}', space=vmem, size = 0x4000, scoped, tag = 'input window, operand 3, single buffered']
    #allocation9 [shape = 's32[1]{0}', space=sflag, size = 0x4, scoped, tag = 'scoped memory for tpu_custom_call.1']
    #allocation10 [shape = 'u8[65536]{0}', space=vmem, size = 0x10000, scoped, tag = 'input window, operand 5, single buffered']
    #allocation11 [shape = 'u8[16384]{0}', space=vmem, size = 0x4000, scoped, tag = 'output window, operand 0, single buffered']
    %12 = vsyncpa [#allocation3], 0
    %13 = vsyncpa [#allocation6], 0
    %14 = vsyncpa [#allocation9], 0
    %15 = vsyncpa [#allocation4], 0
    // Predicated region
    $region2: #{tpu_custom_call.1} parent=1 // pred_check
      _
    $region3: #{tpu_custom_call.1} parent=1 // pred_check_branch
      %17 = sbr.rel (0) target = $region5
    $region4: #{tpu_custom_call.1} parent=1 // pred_region
      %s19 = ssub.s32 512, 512
      %20 = vsyncadd [#allocation3], %s19
      %s21 = sshll.u32 [#allocation2], 4
      %s22 = int_to_ptr.vmem [resolvable:$true] %s21
      %27 = dma.hbm_to_vmem [thread:$0]  %s0, 512, %s22, [#allocation3], 128, 128, 8
    $region5: #{tpu_custom_call.1} parent=1 // pred_fallthru
      _
    // Predicated region
    $region6: #{tpu_custom_call.1} parent=1 // pred_check
      _
    $region7: #{tpu_custom_call.1} parent=1 // pred_check_branch
      %29 = sbr.rel (0) target = $region9
    $region8: #{tpu_custom_call.1} parent=1 // pred_region
      %s31 = ssub.s32 512, 512
      %32 = vsyncadd [#allocation6], %s31
      %s33 = sshll.u32 [#allocation5], 4
      %s34 = int_to_ptr.vmem [resolvable:$true] %s33
      %39 = dma.hbm_to_vmem [thread:$0]  %s1, 512, %s34, [#allocation6], 128, 128, 8
    $region9: #{tpu_custom_call.1} parent=1 // pred_fallthru
      _
    // Predicated region
    $region10: #{tpu_custom_call.1} parent=1 // pred_check
      _
    $region11: #{tpu_custom_call.1} parent=1 // pred_check_branch
      %41 = sbr.rel (0) target = $region13
    $region12: #{tpu_custom_call.1} parent=1 // pred_region
      %s43 = ssub.s32 512, 512
      %44 = vsyncadd [#allocation6], %s43
      %s45 = sshll.u32 [#allocation7], 4
      %s46 = int_to_ptr.vmem [resolvable:$true] %s45
      %51 = dma.hbm_to_vmem [thread:$0]  %s2, 512, %s46, [#allocation6], 128, 128, 8
    $region13: #{tpu_custom_call.1} parent=1 // pred_fallthru
      _
    // Predicated region
    $region14: #{tpu_custom_call.1} parent=1 // pred_check
      _
    $region15: #{tpu_custom_call.1} parent=1 // pred_check_branch
      %53 = sbr.rel (0) target = $region17
    $region16: #{tpu_custom_call.1} parent=1 // pred_region
      %s55 = ssub.s32 512, 512
      %56 = vsyncadd [#allocation9], %s55
      %s57 = sshll.u32 [#allocation8], 4
      %s58 = int_to_ptr.vmem [resolvable:$true] %s57
      %63 = dma.hbm_to_vmem [thread:$0]  %s3, 512, %s58, [#allocation9], 128, 128, 8
    $region17: #{tpu_custom_call.1} parent=1 // pred_fallthru
      _
    // Predicated region
    $region18: #{tpu_custom_call.1} parent=1 // pred_check
      _
    $region19: #{tpu_custom_call.1} parent=1 // pred_check_branch
      %65 = sbr.rel (0) target = $region21
    $region20: #{tpu_custom_call.1} parent=1 // pred_region
      _
    $region21: #{tpu_custom_call.1} parent=1 // pred_fallthru
      _
    // Predicated region
    $region22: #{tpu_custom_call.1} parent=1 // pred_check
      _
    $region23: #{tpu_custom_call.1} parent=1 // pred_check_branch
      %67 = sbr.rel (0) target = $region25
    $region24: #{tpu_custom_call.1} parent=1 // pred_region
      %s69 = ssub.s32 2048, 2048
      %70 = vsyncadd [#allocation9], %s69
      %s71 = sshll.u32 [#allocation10], 4
      %s72 = int_to_ptr.vmem [resolvable:$true] %s71
      %77 = dma.hbm_to_vmem [thread:$0]  %s5, 2048, %s72, [#allocation9], 128, 128, 8
    $region25: #{tpu_custom_call.1} parent=1 // pred_fallthru
      _
    // Predicated region
    $region26: #{tpu_custom_call.1} parent=1 // pred_check
      _
    $region27: #{tpu_custom_call.1} parent=1 // pred_check_branch
      %79 = sbr.rel (0) target = $region29
    $region28: #{tpu_custom_call.1} parent=1 // pred_region
      _
    $region29: #{tpu_custom_call.1} parent=1 // pred_fallthru
      _
    // Predicated region
    $region30: #{tpu_custom_call.1} parent=1 // pred_check
      _
    $region31: #{tpu_custom_call.1} parent=1 // pred_check_branch
      %81 = sbr.rel (0) target = $region33
    $region32: #{tpu_custom_call.1} parent=1 // pred_region
      %82 = dma.done [#allocation3], 512
    $region33: #{tpu_custom_call.1} parent=1 // pred_fallthru
      _
    // Predicated region
    $region34: #{tpu_custom_call.1} parent=1 // pred_check
      _
    $region35: #{tpu_custom_call.1} parent=1 // pred_check_branch
      %84 = sbr.rel (0) target = $region37
    $region36: #{tpu_custom_call.1} parent=1 // pred_region
      %85 = dma.done [#allocation6], 512
    $region37: #{tpu_custom_call.1} parent=1 // pred_fallthru
      _
    // Predicated region
    $region38: #{tpu_custom_call.1} parent=1 // pred_check
      _
    $region39: #{tpu_custom_call.1} parent=1 // pred_check_branch
      %87 = sbr.rel (0) target = $region41
    $region40: #{tpu_custom_call.1} parent=1 // pred_region
      %88 = dma.done [#allocation6], 512
    $region41: #{tpu_custom_call.1} parent=1 // pred_fallthru
      _
    // Predicated region
    $region42: #{tpu_custom_call.1} parent=1 // pred_check
      _
    $region43: #{tpu_custom_call.1} parent=1 // pred_check_branch
      %90 = sbr.rel (0) target = $region45
    $region44: #{tpu_custom_call.1} parent=1 // pred_region
      %91 = dma.done [#allocation9], 512
    $region45: #{tpu_custom_call.1} parent=1 // pred_fallthru
      _
    // Predicated region
    $region46: #{tpu_custom_call.1} parent=1 // pred_check
      _
    $region47: #{tpu_custom_call.1} parent=1 // pred_check_branch
      %93 = sbr.rel (0) target = $region49
    $region48: #{tpu_custom_call.1} parent=1 // pred_region
      %94 = dma.done [#allocation9], 2048
    $region49: #{tpu_custom_call.1} parent=1 // pred_fallthru
      _
    %v95 = vlaneseq
    %v96 = vshrl.u32 %v95, 7
    %v97 = vadd.s32 %v96, 8
    %v98 = vadd.s32 %v96, 16
    %v99 = vadd.s32 %v96, 24
    %v100 = vlaneseq
    %v101 = vand.u32 %v100, 127
    %vm102 = vcmp.eq.s32.totalorder %v96, %v101
    %vm103 = vcmp.eq.s32.totalorder %v97, %v101
    %vm104 = vcmp.eq.s32.totalorder %v98, %v101
    %vm105 = vcmp.eq.s32.totalorder %v99, %v101
    %v106 = vsel %vm102, 0.8232233, 1.0
    %v107 = vsel %vm103, 0.8232233, 1.0
    %v108 = vsel %vm104, 0.8232233, 1.0
    %v109 = vsel %vm105, 0.8232233, 1.0
    %v110 = vld [vmem:[#allocation2] sm:$0xff]
    %v111 = vld [vmem:[#allocation5] sm:$0xff]
    %v112 = vld [vmem:[#allocation7] sm:$0xff]
    %113 = vxpose.xlu0.b32.start [1/16] %v110, 128
    %114 = vxpose.xlu0.b32.cont [2/16] 0.0, 128
    %115 = vxpose.xlu0.b32.cont [3/16] 0.0, 128
    %116 = vxpose.xlu0.b32.cont [4/16] 0.0, 128
    %117 = vxpose.xlu0.b32.cont [5/16] 0.0, 128
    %118 = vxpose.xlu0.b32.cont [6/16] 0.0, 128
    %119 = vxpose.xlu0.b32.cont [7/16] 0.0, 128
    %120 = vxpose.xlu0.b32.cont [8/16] 0.0, 128
    %121 = vxpose.xlu0.b32.cont [9/16] 0.0, 128
    %122 = vxpose.xlu0.b32.cont [10/16] 0.0, 128
    %123 = vxpose.xlu0.b32.cont [11/16] 0.0, 128
    %124 = vxpose.xlu0.b32.cont [12/16] 0.0, 128
    %125 = vxpose.xlu0.b32.cont [13/16] 0.0, 128
    %126 = vxpose.xlu0.b32.cont [14/16] 0.0, 128
    %127 = vxpose.xlu0.b32.cont [15/16] 0.0, 128
    %128 = vxpose.xlu0.b32.end [16/16] 0.0, 128
    %v129 = vpop.trf.xlu0
    %v130 = vpop.trf.xlu0
    %v131 = vpop.trf.xlu0
    %v132 = vpop.trf.xlu0
    %v133 = vpop.trf.xlu0
    %v134 = vpop.trf.xlu0
    %v135 = vpop.trf.xlu0
    %v136 = vpop.trf.xlu0
    %v137 = vpop.trf.xlu0
    %v138 = vpop.trf.xlu0
    %v139 = vpop.trf.xlu0
    %v140 = vpop.trf.xlu0
    %v141 = vpop.trf.xlu0
    %v142 = vpop.trf.xlu0
    %v143 = vpop.trf.xlu0
    %v144 = vpop.trf.xlu0
    %vm145 = vcmask 64512
    %v147 = vsel %vm145, %v129, 0
    %v150 = vsel %vm145, %v130, 0
    %v153 = vsel %vm145, %v131, 0
    %v156 = vsel %vm145, %v132, 0
    %158 = vmatprep.subr.mxu0 0.0
    %159 = vmatpush1.msra.mxu0 %v111
    %160 = vmatprep.subr.mxu0 0.0
    %161 = vmatpush1.msra.mxu0 0.0
    %162 = vmatprep.subr.mxu0 0.0
    %163 = vmatpush1.msra.mxu0 0.0
    %164 = vmatprep.subr.mxu0 0.0
    %165 = vmatpush1.msra.mxu0 0.0
    %166 = vmatprep.subr.mxu0 0.0
    %167 = vmatpush1.msra.mxu0 0.0
    %168 = vmatprep.subr.mxu0 0.0
    %169 = vmatpush1.msra.mxu0 0.0
    %170 = vmatprep.subr.mxu0 0.0
    %171 = vmatpush1.msra.mxu0 0.0
    %172 = vmatprep.subr.mxu0 0.0
    %173 = vmatpush1.msra.mxu0 0.0
    %174 = vmatprep.subr.mxu0 0.0
    %175 = vmatpush1.msra.mxu0 0.0
    %176 = vmatprep.subr.mxu0 0.0
    %177 = vmatpush1.msra.mxu0 0.0
    %178 = vmatprep.subr.mxu0 0.0
    %179 = vmatpush1.msra.mxu0 0.0
    %180 = vmatprep.subr.mxu0 0.0
    %181 = vmatpush1.msra.mxu0 0.0
    %182 = vmatprep.subr.mxu0 0.0
    %183 = vmatpush1.msra.mxu0 0.0
    %184 = vmatprep.subr.mxu0 0.0
    %185 = vmatpush1.msra.mxu0 0.0
    %186 = vmatprep.subr.mxu0 0.0
    %187 = vmatpush1.msra.mxu0 0.0
    %188 = vmatprep.subr.mxu0 0.0
    %189 = vmatpush1.msra.mxu0 0.0
    %190 = vmatprep.subr.mxu0 0.0
    %191 = vmatpush1.msra.mxu0 0.0
    %192 = vmatprep.subr.mxu0 0.0
    %193 = vmatpush1.msra.mxu0 0.0
    %194 = vmatprep.subr.mxu0 0.0
    %195 = vmatpush1.msra.mxu0 0.0
    %196 = vmatprep.subr.mxu0 0.0
    %197 = vmatpush1.msra.mxu0 0.0
    %198 = vmatprep.subr.mxu0 0.0
    %199 = vmatpush1.msra.mxu0 0.0
    %200 = vmatprep.subr.mxu0 0.0
    %201 = vmatpush1.msra.mxu0 0.0
    %202 = vmatprep.subr.mxu0 0.0
    %203 = vmatpush1.msra.mxu0 0.0
    %204 = vmatprep.subr.mxu0 0.0
    %205 = vmatpush1.msra.mxu0 0.0
    %206 = vmatprep.subr.mxu0 0.0
    %207 = vmatpush1.msra.mxu0 0.0
    %208 = vmatprep.subr.mxu0 0.0
    %209 = vmatpush1.msra.mxu0 0.0
    %210 = vmatprep.subr.mxu0 0.0
    %211 = vmatpush1.msra.mxu0 0.0
    %212 = vmatprep.subr.mxu0 0.0
    %213 = vmatpush1.msra.mxu0 0.0
    %214 = vmatprep.subr.mxu0 0.0
    %215 = vmatpush1.msra.mxu0 0.0
    %216 = vmatprep.subr.mxu0 0.0
    %217 = vmatpush1.msra.mxu0 0.0
    %218 = vmatprep.subr.mxu0 0.0
    %219 = vmatpush1.msra.mxu0 0.0
    %220 = vmatprep.subr.mxu0 0.0
    %221 = vmatpush1.msra.mxu0 0.0
    %222 = vmatprep.mubr.f32.mxu0 0.0
    %223 = vmatmul.mubr.f32.gmra.mrb[0].mxu0 %v147
    %v224 = vpop.f32.mrb[0].mxu0
    %v225 = vadd.f32 0.0, %v224
    %v226 = vpop.f32.mrb[0].mxu0
    %227 = vmatprep.mubr.f32.mxu0 0.0
    %228 = vmatmul.mubr.f32.gmra.mrb[0].mxu0 %v150
    %v229 = vpop.f32.mrb[0].mxu0
    %v230 = vadd.f32 0.0, %v229
    %v231 = vpop.f32.mrb[0].mxu0
    %232 = vmatprep.mubr.f32.mxu0 0.0
    %233 = vmatmul.mubr.f32.gmra.mrb[0].mxu0 %v153
    %v234 = vpop.f32.mrb[0].mxu0
    %v235 = vadd.f32 0.0, %v234
    %v236 = vpop.f32.mrb[0].mxu0
    %237 = vmatprep.mubr.f32.mxu0 0.0
    %238 = vmatmul.mubr.f32.gmra.mrb[0].mxu0 %v156
    %v239 = vpop.f32.mrb[0].mxu0
    %v240 = vadd.f32 0.0, %v239
    %v241 = vpop.f32.mrb[0].mxu0
    %242 = vdwg.mxu0
    %v243 = vmul.f32 %v225, %v106
    %v244 = vmul.f32 %v230, %v107
    %v245 = vmul.f32 %v235, %v108
    %v246 = vmul.f32 %v240, %v109
    %v247 = vmul.f32 %v243, 1.442695
    %v248 = vpow.pop %v247
    %v249 = vmul.f32 %v244, 1.442695
    %v250 = vpow.pop %v249
    %v251 = vmul.f32 %v245, 1.442695
    %v252 = vpow.pop %v251
    %v253 = vmul.f32 %v246, 1.442695
    %v254 = vpow.pop %v253
    %vm255 = vcmask 261120
    %v256 = vsel %vm255, %v248, -inf
    %257 = vmax.xlane.f32.xlu0 %v256
    %v258 = vpop.xlane.xlu0 %257
    %v259 = vsel %vm255, %v250, -inf
    %260 = vmax.xlane.f32.xlu0 %v259
    %v261 = vpop.xlane.xlu0 %260
    %v262 = vsel %vm255, %v252, -inf
    %263 = vmax.xlane.f32.xlu0 %v262
    %v264 = vpop.xlane.xlu0 %263
    %v265 = vsel %vm255, %v254, -inf
    %266 = vmax.xlane.f32.xlu0 %v265
    %v267 = vpop.xlane.xlu0 %266
    %v268 = vsub.f32 %v248, %v258
    %v269 = vsub.f32 %v250, %v261
    %v270 = vsub.f32 %v252, %v264
    %v271 = vsub.f32 %v254, %v267
    %v272 = vmul.f32 %v268, 1.442695
    %v273 = vpow.pop %v272
    %v274 = vmul.f32 %v269, 1.442695
    %v275 = vpow.pop %v274
    %v276 = vmul.f32 %v270, 1.442695
    %v277 = vpow.pop %v276
    %v278 = vmul.f32 %v271, 1.442695
    %v279 = vpow.pop %v278
    %v280 = vsel %vm255, %v273, 0.0
    %281 = vadd.xlane.f32.xlu0 %v280
    %v282 = vpop.xlane.xlu0 %281
    %v283 = vsel %vm255, %v275, 0.0
    %284 = vadd.xlane.f32.xlu0 %v283
    %v285 = vpop.xlane.xlu0 %284
    %v286 = vsel %vm255, %v277, 0.0
    %287 = vadd.xlane.f32.xlu0 %v286
    %v288 = vpop.xlane.xlu0 %287
    %v289 = vsel %vm255, %v279, 0.0
    %290 = vadd.xlane.f32.xlu0 %v289
    %v291 = vpop.xlane.xlu0 %290
    %v292 = vrcp.pop %v282
    %v293 = vrcp.pop %v285
    %v294 = vrcp.pop %v288
    %v295 = vrcp.pop %v291
    %v296 = vmul.f32 %v273, %v292
    %v297 = vmul.f32 %v275, %v293
    %v298 = vmul.f32 %v277, %v294
    %v299 = vmul.f32 %v279, %v295
    %v301 = vsel %vm255, %v112, 0
    %v304 = vsel %vm255, %v296, 0
    %v307 = vsel %vm255, %v297, 0
    %v310 = vsel %vm255, %v298, 0
    %v313 = vsel %vm255, %v299, 0
    %315 = vmatprep.subr.mxu0 0.0
    %316 = vmatpush1.xpose.msra.mxu0 %v304
    %317 = vmatprep.subr.mxu0 0.0
    %318 = vmatpush1.xpose.msra.mxu0 %v307
    %319 = vmatprep.subr.mxu0 0.0
    %320 = vmatpush1.xpose.msra.mxu0 %v310
    %321 = vmatprep.subr.mxu0 0.0
    %322 = vmatpush1.xpose.msra.mxu0 %v313
    %323 = vmatprep.subr.mxu0 0.0
    %324 = vmatpush1.xpose.msra.mxu0 0.0
    %325 = vmatprep.subr.mxu0 0.0
    %326 = vmatpush1.xpose.msra.mxu0 0.0
    %327 = vmatprep.subr.mxu0 0.0
    %328 = vmatpush1.xpose.msra.mxu0 0.0
    %329 = vmatprep.subr.mxu0 0.0
    %330 = vmatpush1.xpose.msra.mxu0 0.0
    %331 = vmatprep.subr.mxu0 0.0
    %332 = vmatpush1.xpose.msra.mxu0 0.0
    %333 = vmatprep.subr.mxu0 0.0
    %334 = vmatpush1.xpose.msra.mxu0 0.0
    %335 = vmatprep.subr.mxu0 0.0
    %336 = vmatpush1.xpose.msra.mxu0 0.0
    %337 = vmatprep.subr.mxu0 0.0
    %338 = vmatpush1.xpose.msra.mxu0 0.0
    %339 = vmatprep.subr.mxu0 0.0
    %340 = vmatpush1.xpose.msra.mxu0 0.0
    %341 = vmatprep.subr.mxu0 0.0
    %342 = vmatpush1.xpose.msra.mxu0 0.0
    %343 = vmatprep.subr.mxu0 0.0
    %344 = vmatpush1.xpose.msra.mxu0 0.0
    %345 = vmatprep.subr.mxu0 0.0
    %346 = vmatpush1.xpose.msra.mxu0 0.0
    %347 = vmatprep.subr.mxu0 0.0
    %348 = vmatpush1.xpose.msra.mxu0 0.0
    %349 = vmatprep.subr.mxu0 0.0
    %350 = vmatpush1.xpose.msra.mxu0 0.0
    %351 = vmatprep.subr.mxu0 0.0
    %352 = vmatpush1.xpose.msra.mxu0 0.0
    %353 = vmatprep.subr.mxu0 0.0
    %354 = vmatpush1.xpose.msra.mxu0 0.0
    %355 = vmatprep.subr.mxu0 0.0
    %356 = vmatpush1.xpose.msra.mxu0 0.0
    %357 = vmatprep.subr.mxu0 0.0
    %358 = vmatpush1.xpose.msra.mxu0 0.0
    %359 = vmatprep.subr.mxu0 0.0
    %360 = vmatpush1.xpose.msra.mxu0 0.0
    %361 = vmatprep.subr.mxu0 0.0
    %362 = vmatpush1.xpose.msra.mxu0 0.0
    %363 = vmatprep.subr.mxu0 0.0
    %364 = vmatpush1.xpose.msra.mxu0 0.0
    %365 = vmatprep.subr.mxu0 0.0
    %366 = vmatpush1.xpose.msra.mxu0 0.0
    %367 = vmatprep.subr.mxu0 0.0
    %368 = vmatpush1.xpose.msra.mxu0 0.0
    %369 = vmatprep.subr.mxu0 0.0
    %370 = vmatpush1.xpose.msra.mxu0 0.0
    %371 = vmatprep.subr.mxu0 0.0
    %372 = vmatpush1.xpose.msra.mxu0 0.0
    %373 = vmatprep.subr.mxu0 0.0
    %374 = vmatpush1.xpose.msra.mxu0 0.0
    %375 = vmatprep.subr.mxu0 0.0
    %376 = vmatpush1.xpose.msra.mxu0 0.0
    %377 = vmatprep.subr.mxu0 0.0
    %378 = vmatpush1.xpose.msra.mxu0 0.0
    %379 = vmatprep.mubr.f32.mxu0 0.0
    %380 = vmatmul.mubr.f32.gmra.mrb[0].mxu0 %v301
    %v381 = vpop.f32.mrb[0].mxu0
    %v382 = vadd.f32 0.0, %v381
    %v383 = vpop.f32.mrb[0].mxu0
    %384 = vdwg.mxu0
    %s385 = scalar_lea.vmem [#allocation2], 8
    %v386 = vld [vmem:[%s385] sm:$0xff]
    %s387 = scalar_lea.vmem [#allocation5], 8
    %v388 = vld [vmem:[%s387] sm:$0xff]
    %s389 = scalar_lea.vmem [#allocation7], 8
    %v390 = vld [vmem:[%s389] sm:$0xff]
    %391 = vxpose.xlu0.b32.start [1/16] %v386, 128
    %392 = vxpose.xlu0.b32.cont [2/16] 0.0, 128
    %393 = vxpose.xlu0.b32.cont [3/16] 0.0, 128
    %394 = vxpose.xlu0.b32.cont [4/16] 0.0, 128
    %395 = vxpose.xlu0.b32.cont [5/16] 0.0, 128
    %396 = vxpose.xlu0.b32.cont [6/16] 0.0, 128
    %397 = vxpose.xlu0.b32.cont [7/16] 0.0, 128
    %398 = vxpose.xlu0.b32.cont [8/16] 0.0, 128
    %399 = vxpose.xlu0.b32.cont [9/16] 0.0, 128
    %400 = vxpose.xlu0.b32.cont [10/16] 0.0, 128
    %401 = vxpose.xlu0.b32.cont [11/16] 0.0, 128
    %402 = vxpose.xlu0.b32.cont [12/16] 0.0, 128
    %403 = vxpose.xlu0.b32.cont [13/16] 0.0, 128
    %404 = vxpose.xlu0.b32.cont [14/16] 0.0, 128
    %405 = vxpose.xlu0.b32.cont [15/16] 0.0, 128
    %406 = vxpose.xlu0.b32.end [16/16] 0.0, 128
    %v407 = vpop.trf.xlu0
    %v408 = vpop.trf.xlu0
    %v409 = vpop.trf.xlu0
    %v410 = vpop.trf.xlu0
    %v411 = vpop.trf.xlu0
    %v412 = vpop.trf.xlu0
    %v413 = vpop.trf.xlu0
    %v414 = vpop.trf.xlu0
    %v415 = vpop.trf.xlu0
    %v416 = vpop.trf.xlu0
    %v417 = vpop.trf.xlu0
    %v418 = vpop.trf.xlu0
    %v419 = vpop.trf.xlu0
    %v420 = vpop.trf.xlu0
    %v421 = vpop.trf.xlu0
    %v422 = vpop.trf.xlu0
    %v424 = vsel %vm145, %v407, 0
    %v427 = vsel %vm145, %v408, 0
    %v430 = vsel %vm145, %v409, 0
    %v433 = vsel %vm145, %v410, 0
    %435 = vmatprep.subr.mxu0 0.0
    %436 = vmatpush1.msra.mxu0 %v388
    %437 = vmatprep.subr.mxu0 0.0
    %438 = vmatpush1.msra.mxu0 0.0
    %439 = vmatprep.subr.mxu0 0.0
    %440 = vmatpush1.msra.mxu0 0.0
    %441 = vmatprep.subr.mxu0 0.0
    %442 = vmatpush1.msra.mxu0 0.0
    %443 = vmatprep.subr.mxu0 0.0
    %444 = vmatpush1.msra.mxu0 0.0
    %445 = vmatprep.subr.mxu0 0.0
    %446 = vmatpush1.msra.mxu0 0.0
    %447 = vmatprep.subr.mxu0 0.0
    %448 = vmatpush1.msra.mxu0 0.0
    %449 = vmatprep.subr.mxu0 0.0
    %450 = vmatpush1.msra.mxu0 0.0
    %451 = vmatprep.subr.mxu0 0.0
    %452 = vmatpush1.msra.mxu0 0.0
    %453 = vmatprep.subr.mxu0 0.0
    %454 = vmatpush1.msra.mxu0 0.0
    %455 = vmatprep.subr.mxu0 0.0
    %456 = vmatpush1.msra.mxu0 0.0
    %457 = vmatprep.subr.mxu0 0.0
    %458 = vmatpush1.msra.mxu0 0.0
    %459 = vmatprep.subr.mxu0 0.0
    %460 = vmatpush1.msra.mxu0 0.0
    %461 = vmatprep.subr.mxu0 0.0
    %462 = vmatpush1.msra.mxu0 0.0
    %463 = vmatprep.subr.mxu0 0.0
    %464 = vmatpush1.msra.mxu0 0.0
    %465 = vmatprep.subr.mxu0 0.0
    %466 = vmatpush1.msra.mxu0 0.0
    %467 = vmatprep.subr.mxu0 0.0
    %468 = vmatpush1.msra.mxu0 0.0
    %469 = vmatprep.subr.mxu0 0.0
    %470 = vmatpush1.msra.mxu0 0.0
    %471 = vmatprep.subr.mxu0 0.0
    %472 = vmatpush1.msra.mxu0 0.0
    %473 = vmatprep.subr.mxu0 0.0
    %474 = vmatpush1.msra.mxu0 0.0
    %475 = vmatprep.subr.mxu0 0.0
    %476 = vmatpush1.msra.mxu0 0.0
    %477 = vmatprep.subr.mxu0 0.0
    %478 = vmatpush1.msra.mxu0 0.0
    %479 = vmatprep.subr.mxu0 0.0
    %480 = vmatpush1.msra.mxu0 0.0
    %481 = vmatprep.subr.mxu0 0.0
    %482 = vmatpush1.msra.mxu0 0.0
    %483 = vmatprep.subr.mxu0 0.0
    %484 = vmatpush1.msra.mxu0 0.0
    %485 = vmatprep.subr.mxu0 0.0
    %486 = vmatpush1.msra.mxu0 0.0
    %487 = vmatprep.subr.mxu0 0.0
    %488 = vmatpush1.msra.mxu0 0.0
    %489 = vmatprep.subr.mxu0 0.0
    %490 = vmatpush1.msra.mxu0 0.0
    %491 = vmatprep.subr.mxu0 0.0
    %492 = vmatpush1.msra.mxu0 0.0
    %493 = vmatprep.subr.mxu0 0.0
    %494 = vmatpush1.msra.mxu0 0.0
    %495 = vmatprep.subr.mxu0 0.0
    %496 = vmatpush1.msra.mxu0 0.0
    %497 = vmatprep.subr.mxu0 0.0
    %498 = vmatpush1.msra.mxu0 0.0
    %499 = vmatprep.mubr.f32.mxu0 0.0
    %500 = vmatmul.mubr.f32.gmra.mrb[0].mxu0 %v424
    %v501 = vpop.f32.mrb[0].mxu0
    %v502 = vadd.f32 0.0, %v501
    %v503 = vpop.f32.mrb[0].mxu0
    %504 = vmatprep.mubr.f32.mxu0 0.0
    %505 = vmatmul.mubr.f32.gmra.mrb[0].mxu0 %v427
    %v506 = vpop.f32.mrb[0].mxu0
    %v507 = vadd.f32 0.0, %v506
    %v508 = vpop.f32.mrb[0].mxu0
    %509 = vmatprep.mubr.f32.mxu0 0.0
    %510 = vmatmul.mubr.f32.gmra.mrb[0].mxu0 %v430
    %v511 = vpop.f32.mrb[0].mxu0
    %v512 = vadd.f32 0.0, %v511
    %v513 = vpop.f32.mrb[0].mxu0
    %514 = vmatprep.mubr.f32.mxu0 0.0
    %515 = vmatmul.mubr.f32.gmra.mrb[0].mxu0 %v433
    %v516 = vpop.f32.mrb[0].mxu0
    %v517 = vadd.f32 0.0, %v516
    %v518 = vpop.f32.mrb[0].mxu0
    %519 = vdwg.mxu0
    %v520 = vmul.f32 %v502, %v106
    %v521 = vmul.f32 %v507, %v107
    %v522 = vmul.f32 %v512, %v108
    %v523 = vmul.f32 %v517, %v109
    %v524 = vmul.f32 %v520, 1.442695
    %v525 = vpow.pop %v524
    %v526 = vmul.f32 %v521, 1.442695
    %v527 = vpow.pop %v526
    %v528 = vmul.f32 %v522, 1.442695
    %v529 = vpow.pop %v528
    %v530 = vmul.f32 %v523, 1.442695
    %v531 = vpow.pop %v530
    %v532 = vsel %vm255, %v525, -inf
    %533 = vmax.xlane.f32.xlu0 %v532
    %v534 = vpop.xlane.xlu0 %533
    %v535 = vsel %vm255, %v527, -inf
    %536 = vmax.xlane.f32.xlu0 %v535
    %v537 = vpop.xlane.xlu0 %536
    %v538 = vsel %vm255, %v529, -inf
    %539 = vmax.xlane.f32.xlu0 %v538
    %v540 = vpop.xlane.xlu0 %539
    %v541 = vsel %vm255, %v531, -inf
    %542 = vmax.xlane.f32.xlu0 %v541
    %v543 = vpop.xlane.xlu0 %542
    %v544 = vsub.f32 %v525, %v534
    %v545 = vsub.f32 %v527, %v537
    %v546 = vsub.f32 %v529, %v540
    %v547 = vsub.f32 %v531, %v543
    %v548 = vmul.f32 %v544, 1.442695
    %v549 = vpow.pop %v548
    %v550 = vmul.f32 %v545, 1.442695
    %v551 = vpow.pop %v550
    %v552 = vmul.f32 %v546, 1.442695
    %v553 = vpow.pop %v552
    %v554 = vmul.f32 %v547, 1.442695
    %v555 = vpow.pop %v554
    %v556 = vsel %vm255, %v549, 0.0
    %557 = vadd.xlane.f32.xlu0 %v556
    %v558 = vpop.xlane.xlu0 %557
    %v559 = vsel %vm255, %v551, 0.0
    %560 = vadd.xlane.f32.xlu0 %v559
    %v561 = vpop.xlane.xlu0 %560
    %v562 = vsel %vm255, %v553, 0.0
    %563 = vadd.xlane.f32.xlu0 %v562
    %v564 = vpop.xlane.xlu0 %563
    %v565 = vsel %vm255, %v555, 0.0
    %566 = vadd.xlane.f32.xlu0 %v565
    %v567 = vpop.xlane.xlu0 %566
    %v568 = vrcp.pop %v558
    %v569 = vrcp.pop %v561
    %v570 = vrcp.pop %v564
    %v571 = vrcp.pop %v567
    %v572 = vmul.f32 %v549, %v568
    %v573 = vmul.f32 %v551, %v569
    %v574 = vmul.f32 %v553, %v570
    %v575 = vmul.f32 %v555, %v571
    %v577 = vsel %vm255, %v390, 0
    %v580 = vsel %vm255, %v572, 0
    %v583 = vsel %vm255, %v573, 0
    %v586 = vsel %vm255, %v574, 0
    %v589 = vsel %vm255, %v575, 0
    %591 = vmatprep.subr.mxu0 0.0
    %592 = vmatpush1.xpose.msra.mxu0 %v580
    %593 = vmatprep.subr.mxu0 0.0
    %594 = vmatpush1.xpose.msra.mxu0 %v583
    %595 = vmatprep.subr.mxu0 0.0
    %596 = vmatpush1.xpose.msra.mxu0 %v586
    %597 = vmatprep.subr.mxu0 0.0
    %598 = vmatpush1.xpose.msra.mxu0 %v589
    %599 = vmatprep.subr.mxu0 0.0
    %600 = vmatpush1.xpose.msra.mxu0 0.0
    %601 = vmatprep.subr.mxu0 0.0
    %602 = vmatpush1.xpose.msra.mxu0 0.0
    %603 = vmatprep.subr.mxu0 0.0
    %604 = vmatpush1.xpose.msra.mxu0 0.0
    %605 = vmatprep.subr.mxu0 0.0
    %606 = vmatpush1.xpose.msra.mxu0 0.0
    %607 = vmatprep.subr.mxu0 0.0
    %608 = vmatpush1.xpose.msra.mxu0 0.0
    %609 = vmatprep.subr.mxu0 0.0
    %610 = vmatpush1.xpose.msra.mxu0 0.0
    %611 = vmatprep.subr.mxu0 0.0
    %612 = vmatpush1.xpose.msra.mxu0 0.0
    %613 = vmatprep.subr.mxu0 0.0
    %614 = vmatpush1.xpose.msra.mxu0 0.0
    %615 = vmatprep.subr.mxu0 0.0
    %616 = vmatpush1.xpose.msra.mxu0 0.0
    %617 = vmatprep.subr.mxu0 0.0
    %618 = vmatpush1.xpose.msra.mxu0 0.0
    %619 = vmatprep.subr.mxu0 0.0
    %620 = vmatpush1.xpose.msra.mxu0 0.0
    %621 = vmatprep.subr.mxu0 0.0
    %622 = vmatpush1.xpose.msra.mxu0 0.0
    %623 = vmatprep.subr.mxu0 0.0
    %624 = vmatpush1.xpose.msra.mxu0 0.0
    %625 = vmatprep.subr.mxu0 0.0
    %626 = vmatpush1.xpose.msra.mxu0 0.0
    %627 = vmatprep.subr.mxu0 0.0
    %628 = vmatpush1.xpose.msra.mxu0 0.0
    %629 = vmatprep.subr.mxu0 0.0
    %630 = vmatpush1.xpose.msra.mxu0 0.0
    %631 = vmatprep.subr.mxu0 0.0
    %632 = vmatpush1.xpose.msra.mxu0 0.0
    %633 = vmatprep.subr.mxu0 0.0
    %634 = vmatpush1.xpose.msra.mxu0 0.0
    %635 = vmatprep.subr.mxu0 0.0
    %636 = vmatpush1.xpose.msra.mxu0 0.0
    %637 = vmatprep.subr.mxu0 0.0
    %638 = vmatpush1.xpose.msra.mxu0 0.0
    %639 = vmatprep.subr.mxu0 0.0
    %640 = vmatpush1.xpose.msra.mxu0 0.0
    %641 = vmatprep.subr.mxu0 0.0
    %642 = vmatpush1.xpose.msra.mxu0 0.0
    %643 = vmatprep.subr.mxu0 0.0
    %644 = vmatpush1.xpose.msra.mxu0 0.0
    %645 = vmatprep.subr.mxu0 0.0
    %646 = vmatpush1.xpose.msra.mxu0 0.0
    %647 = vmatprep.subr.mxu0 0.0
    %648 = vmatpush1.xpose.msra.mxu0 0.0
    %649 = vmatprep.subr.mxu0 0.0
    %650 = vmatpush1.xpose.msra.mxu0 0.0
    %651 = vmatprep.subr.mxu0 0.0
    %652 = vmatpush1.xpose.msra.mxu0 0.0
    %653 = vmatprep.subr.mxu0 0.0
    %654 = vmatpush1.xpose.msra.mxu0 0.0
    %655 = vmatprep.mubr.f32.mxu0 0.0
    %656 = vmatmul.mubr.f32.gmra.mrb[0].mxu0 %v577
    %v657 = vpop.f32.mrb[0].mxu0
    %v658 = vadd.f32 0.0, %v657
    %v659 = vpop.f32.mrb[0].mxu0
    %660 = vdwg.mxu0
    %s661 = scalar_lea.vmem [#allocation2], 16
    %v662 = vld [vmem:[%s661] sm:$0xff]
    %s663 = scalar_lea.vmem [#allocation5], 16
    %v664 = vld [vmem:[%s663] sm:$0xff]
    %s665 = scalar_lea.vmem [#allocation7], 16
    %v666 = vld [vmem:[%s665] sm:$0xff]
    %667 = vxpose.xlu0.b32.start [1/16] %v662, 128
    %668 = vxpose.xlu0.b32.cont [2/16] 0.0, 128
    %669 = vxpose.xlu0.b32.cont [3/16] 0.0, 128
    %670 = vxpose.xlu0.b32.cont [4/16] 0.0, 128
    %671 = vxpose.xlu0.b32.cont [5/16] 0.0, 128
    %672 = vxpose.xlu0.b32.cont [6/16] 0.0, 128
    %673 = vxpose.xlu0.b32.cont [7/16] 0.0, 128
    %674 = vxpose.xlu0.b32.cont [8/16] 0.0, 128
    %675 = vxpose.xlu0.b32.cont [9/16] 0.0, 128
    %676 = vxpose.xlu0.b32.cont [10/16] 0.0, 128
    %677 = vxpose.xlu0.b32.cont [11/16] 0.0, 128
    %678 = vxpose.xlu0.b32.cont [12/16] 0.0, 128
    %679 = vxpose.xlu0.b32.cont [13/16] 0.0, 128
    %680 = vxpose.xlu0.b32.cont [14/16] 0.0, 128
    %681 = vxpose.xlu0.b32.cont [15/16] 0.0, 128
    %682 = vxpose.xlu0.b32.end [16/16] 0.0, 128
    %v683 = vpop.trf.xlu0
    %v684 = vpop.trf.xlu0
    %v685 = vpop.trf.xlu0
    %v686 = vpop.trf.xlu0
    %v687 = vpop.trf.xlu0
    %v688 = vpop.trf.xlu0
    %v689 = vpop.trf.xlu0
    %v690 = vpop.trf.xlu0
    %v691 = vpop.trf.xlu0
    %v692 = vpop.trf.xlu0
    %v693 = vpop.trf.xlu0
    %v694 = vpop.trf.xlu0
    %v695 = vpop.trf.xlu0
    %v696 = vpop.trf.xlu0
    %v697 = vpop.trf.xlu0
    %v698 = vpop.trf.xlu0
    %v700 = vsel %vm145, %v683, 0
    %v703 = vsel %vm145, %v684, 0
    %v706 = vsel %vm145, %v685, 0
    %v709 = vsel %vm145, %v686, 0
    %711 = vmatprep.subr.mxu0 0.0
    %712 = vmatpush1.msra.mxu0 %v664
    %713 = vmatprep.subr.mxu0 0.0
    %714 = vmatpush1.msra.mxu0 0.0
    %715 = vmatprep.subr.mxu0 0.0
    %716 = vmatpush1.msra.mxu0 0.0
    %717 = vmatprep.subr.mxu0 0.0
    %718 = vmatpush1.msra.mxu0 0.0
    %719 = vmatprep.subr.mxu0 0.0
    %720 = vmatpush1.msra.mxu0 0.0
    %721 = vmatprep.subr.mxu0 0.0
    %722 = vmatpush1.msra.mxu0 0.0
    %723 = vmatprep.subr.mxu0 0.0
    %724 = vmatpush1.msra.mxu0 0.0
    %725 = vmatprep.subr.mxu0 0.0
    %726 = vmatpush1.msra.mxu0 0.0
    %727 = vmatprep.subr.mxu0 0.0
    %728 = vmatpush1.msra.mxu0 0.0
    %729 = vmatprep.subr.mxu0 0.0
    %730 = vmatpush1.msra.mxu0 0.0
    %731 = vmatprep.subr.mxu0 0.0
    %732 = vmatpush1.msra.mxu0 0.0
    %733 = vmatprep.subr.mxu0 0.0
    %734 = vmatpush1.msra.mxu0 0.0
    %735 = vmatprep.subr.mxu0 0.0
    %736 = vmatpush1.msra.mxu0 0.0
    %737 = vmatprep.subr.mxu0 0.0
    %738 = vmatpush1.msra.mxu0 0.0
    %739 = vmatprep.subr.mxu0 0.0
    %740 = vmatpush1.msra.mxu0 0.0
    %741 = vmatprep.subr.mxu0 0.0
    %742 = vmatpush1.msra.mxu0 0.0
    %743 = vmatprep.subr.mxu0 0.0
    %744 = vmatpush1.msra.mxu0 0.0
    %745 = vmatprep.subr.mxu0 0.0
    %746 = vmatpush1.msra.mxu0 0.0
    %747 = vmatprep.subr.mxu0 0.0
    %748 = vmatpush1.msra.mxu0 0.0
    %749 = vmatprep.subr.mxu0 0.0
    %750 = vmatpush1.msra.mxu0 0.0
    %751 = vmatprep.subr.mxu0 0.0
    %752 = vmatpush1.msra.mxu0 0.0
    %753 = vmatprep.subr.mxu0 0.0
    %754 = vmatpush1.msra.mxu0 0.0
    %755 = vmatprep.subr.mxu0 0.0
    %756 = vmatpush1.msra.mxu0 0.0
    %757 = vmatprep.subr.mxu0 0.0
    %758 = vmatpush1.msra.mxu0 0.0
    %759 = vmatprep.subr.mxu0 0.0
    %760 = vmatpush1.msra.mxu0 0.0
    %761 = vmatprep.subr.mxu0 0.0
    %762 = vmatpush1.msra.mxu0 0.0
    %763 = vmatprep.subr.mxu0 0.0
    %764 = vmatpush1.msra.mxu0 0.0
    %765 = vmatprep.subr.mxu0 0.0
    %766 = vmatpush1.msra.mxu0 0.0
    %767 = vmatprep.subr.mxu0 0.0
    %768 = vmatpush1.msra.mxu0 0.0
    %769 = vmatprep.subr.mxu0 0.0
    %770 = vmatpush1.msra.mxu0 0.0
    %771 = vmatprep.subr.mxu0 0.0
    %772 = vmatpush1.msra.mxu0 0.0
    %773 = vmatprep.subr.mxu0 0.0
    %774 = vmatpush1.msra.mxu0 0.0
    %775 = vmatprep.mubr.f32.mxu0 0.0
    %776 = vmatmul.mubr.f32.gmra.mrb[0].mxu0 %v700
    %v777 = vpop.f32.mrb[0].mxu0
    %v778 = vadd.f32 0.0, %v777
    %v779 = vpop.f32.mrb[0].mxu0
    %780 = vmatprep.mubr.f32.mxu0 0.0
    %781 = vmatmul.mubr.f32.gmra.mrb[0].mxu0 %v703
    %v782 = vpop.f32.mrb[0].mxu0
    %v783 = vadd.f32 0.0, %v782
    %v784 = vpop.f32.mrb[0].mxu0
    %785 = vmatprep.mubr.f32.mxu0 0.0
    %786 = vmatmul.mubr.f32.gmra.mrb[0].mxu0 %v706
    %v787 = vpop.f32.mrb[0].mxu0
    %v788 = vadd.f32 0.0, %v787
    %v789 = vpop.f32.mrb[0].mxu0
    %790 = vmatprep.mubr.f32.mxu0 0.0
    %791 = vmatmul.mubr.f32.gmra.mrb[0].mxu0 %v709
    %v792 = vpop.f32.mrb[0].mxu0
    %v793 = vadd.f32 0.0, %v792
    %v794 = vpop.f32.mrb[0].mxu0
    %795 = vdwg.mxu0
    %v796 = vmul.f32 %v778, %v106
    %v797 = vmul.f32 %v783, %v107
    %v798 = vmul.f32 %v788, %v108
    %v799 = vmul.f32 %v793, %v109
    %v800 = vmul.f32 %v796, 1.442695
    %v801 = vpow.pop %v800
    %v802 = vmul.f32 %v797, 1.442695
    %v803 = vpow.pop %v802
    %v804 = vmul.f32 %v798, 1.442695
    %v805 = vpow.pop %v804
    %v806 = vmul.f32 %v799, 1.442695
    %v807 = vpow.pop %v806
    %v808 = vsel %vm255, %v801, -inf
    %809 = vmax.xlane.f32.xlu0 %v808
    %v810 = vpop.xlane.xlu0 %809
    %v811 = vsel %vm255, %v803, -inf
    %812 = vmax.xlane.f32.xlu0 %v811
    %v813 = vpop.xlane.xlu0 %812
    %v814 = vsel %vm255, %v805, -inf
    %815 = vmax.xlane.f32.xlu0 %v814
    %v816 = vpop.xlane.xlu0 %815
    %v817 = vsel %vm255, %v807, -inf
    %818 = vmax.xlane.f32.xlu0 %v817
    %v819 = vpop.xlane.xlu0 %818
    %v820 = vsub.f32 %v801, %v810
    %v821 = vsub.f32 %v803, %v813
    %v822 = vsub.f32 %v805, %v816
    %v823 = vsub.f32 %v807, %v819
    %v824 = vmul.f32 %v820, 1.442695
    %v825 = vpow.pop %v824
    %v826 = vmul.f32 %v821, 1.442695
    %v827 = vpow.pop %v826
    %v828 = vmul.f32 %v822, 1.442695
    %v829 = vpow.pop %v828
    %v830 = vmul.f32 %v823, 1.442695
    %v831 = vpow.pop %v830
    %v832 = vsel %vm255, %v825, 0.0
    %833 = vadd.xlane.f32.xlu0 %v832
    %v834 = vpop.xlane.xlu0 %833
    %v835 = vsel %vm255, %v827, 0.0
    %836 = vadd.xlane.f32.xlu0 %v835
    %v837 = vpop.xlane.xlu0 %836
    %v838 = vsel %vm255, %v829, 0.0
    %839 = vadd.xlane.f32.xlu0 %v838
    %v840 = vpop.xlane.xlu0 %839
    %v841 = vsel %vm255, %v831, 0.0
    %842 = vadd.xlane.f32.xlu0 %v841
    %v843 = vpop.xlane.xlu0 %842
    %v844 = vrcp.pop %v834
    %v845 = vrcp.pop %v837
    %v846 = vrcp.pop %v840
    %v847 = vrcp.pop %v843
    %v848 = vmul.f32 %v825, %v844
    %v849 = vmul.f32 %v827, %v845
    %v850 = vmul.f32 %v829, %v846
    %v851 = vmul.f32 %v831, %v847
    %v853 = vsel %vm255, %v666, 0
    %v856 = vsel %vm255, %v848, 0
    %v859 = vsel %vm255, %v849, 0
    %v862 = vsel %vm255, %v850, 0
    %v865 = vsel %vm255, %v851, 0
    %867 = vmatprep.subr.mxu0 0.0
    %868 = vmatpush1.xpose.msra.mxu0 %v856
    %869 = vmatprep.subr.mxu0 0.0
    %870 = vmatpush1.xpose.msra.mxu0 %v859
    %871 = vmatprep.subr.mxu0 0.0
    %872 = vmatpush1.xpose.msra.mxu0 %v862
    %873 = vmatprep.subr.mxu0 0.0
    %874 = vmatpush1.xpose.msra.mxu0 %v865
    %875 = vmatprep.subr.mxu0 0.0
    %876 = vmatpush1.xpose.msra.mxu0 0.0
    %877 = vmatprep.subr.mxu0 0.0
    %878 = vmatpush1.xpose.msra.mxu0 0.0
    %879 = vmatprep.subr.mxu0 0.0
    %880 = vmatpush1.xpose.msra.mxu0 0.0
    %881 = vmatprep.subr.mxu0 0.0
    %882 = vmatpush1.xpose.msra.mxu0 0.0
    %883 = vmatprep.subr.mxu0 0.0
    %884 = vmatpush1.xpose.msra.mxu0 0.0
    %885 = vmatprep.subr.mxu0 0.0
    %886 = vmatpush1.xpose.msra.mxu0 0.0
    %887 = vmatprep.subr.mxu0 0.0
    %888 = vmatpush1.xpose.msra.mxu0 0.0
    %889 = vmatprep.subr.mxu0 0.0
    %890 = vmatpush1.xpose.msra.mxu0 0.0
    %891 = vmatprep.subr.mxu0 0.0
    %892 = vmatpush1.xpose.msra.mxu0 0.0
    %893 = vmatprep.subr.mxu0 0.0
    %894 = vmatpush1.xpose.msra.mxu0 0.0
    %895 = vmatprep.subr.mxu0 0.0
    %896 = vmatpush1.xpose.msra.mxu0 0.0
    %897 = vmatprep.subr.mxu0 0.0
    %898 = vmatpush1.xpose.msra.mxu0 0.0
    %899 = vmatprep.subr.mxu0 0.0
    %900 = vmatpush1.xpose.msra.mxu0 0.0
    %901 = vmatprep.subr.mxu0 0.0
    %902 = vmatpush1.xpose.msra.mxu0 0.0
    %903 = vmatprep.subr.mxu0 0.0
    %904 = vmatpush1.xpose.msra.mxu0 0.0
    %905 = vmatprep.subr.mxu0 0.0
    %906 = vmatpush1.xpose.msra.mxu0 0.0
    %907 = vmatprep.subr.mxu0 0.0
    %908 = vmatpush1.xpose.msra.mxu0 0.0
    %909 = vmatprep.subr.mxu0 0.0
    %910 = vmatpush1.xpose.msra.mxu0 0.0
    %911 = vmatprep.subr.mxu0 0.0
    %912 = vmatpush1.xpose.msra.mxu0 0.0
    %913 = vmatprep.subr.mxu0 0.0
    %914 = vmatpush1.xpose.msra.mxu0 0.0
    %915 = vmatprep.subr.mxu0 0.0
    %916 = vmatpush1.xpose.msra.mxu0 0.0
    %917 = vmatprep.subr.mxu0 0.0
    %918 = vmatpush1.xpose.msra.mxu0 0.0
    %919 = vmatprep.subr.mxu0 0.0
    %920 = vmatpush1.xpose.msra.mxu0 0.0
    %921 = vmatprep.subr.mxu0 0.0
    %922 = vmatpush1.xpose.msra.mxu0 0.0
    %923 = vmatprep.subr.mxu0 0.0
    %924 = vmatpush1.xpose.msra.mxu0 0.0
    %925 = vmatprep.subr.mxu0 0.0
    %926 = vmatpush1.xpose.msra.mxu0 0.0
    %927 = vmatprep.subr.mxu0 0.0
    %928 = vmatpush1.xpose.msra.mxu0 0.0
    %929 = vmatprep.subr.mxu0 0.0
    %930 = vmatpush1.xpose.msra.mxu0 0.0
    %931 = vmatprep.mubr.f32.mxu0 0.0
    %932 = vmatmul.mubr.f32.gmra.mrb[0].mxu0 %v853
    %v933 = vpop.f32.mrb[0].mxu0
    %v934 = vadd.f32 0.0, %v933
    %v935 = vpop.f32.mrb[0].mxu0
    %936 = vdwg.mxu0
    %s937 = scalar_lea.vmem [#allocation2], 24
    %v938 = vld [vmem:[%s937] sm:$0xff]
    %s939 = scalar_lea.vmem [#allocation5], 24
    %v940 = vld [vmem:[%s939] sm:$0xff]
    %s941 = scalar_lea.vmem [#allocation7], 24
    %v942 = vld [vmem:[%s941] sm:$0xff]
    %943 = vxpose.xlu0.b32.start [1/16] %v938, 128
    %944 = vxpose.xlu0.b32.cont [2/16] 0.0, 128
    %945 = vxpose.xlu0.b32.cont [3/16] 0.0, 128
    %946 = vxpose.xlu0.b32.cont [4/16] 0.0, 128
    %947 = vxpose.xlu0.b32.cont [5/16] 0.0, 128
    %948 = vxpose.xlu0.b32.cont [6/16] 0.0, 128
    %949 = vxpose.xlu0.b32.cont [7/16] 0.0, 128
    %950 = vxpose.xlu0.b32.cont [8/16] 0.0, 128
    %951 = vxpose.xlu0.b32.cont [9/16] 0.0, 128
    %952 = vxpose.xlu0.b32.cont [10/16] 0.0, 128
    %953 = vxpose.xlu0.b32.cont [11/16] 0.0, 128
    %954 = vxpose.xlu0.b32.cont [12/16] 0.0, 128
    %955 = vxpose.xlu0.b32.cont [13/16] 0.0, 128
    %956 = vxpose.xlu0.b32.cont [14/16] 0.0, 128
    %957 = vxpose.xlu0.b32.cont [15/16] 0.0, 128
    %958 = vxpose.xlu0.b32.end [16/16] 0.0, 128
    %v959 = vpop.trf.xlu0
    %v960 = vpop.trf.xlu0
    %v961 = vpop.trf.xlu0
    %v962 = vpop.trf.xlu0
    %v963 = vpop.trf.xlu0
    %v964 = vpop.trf.xlu0
    %v965 = vpop.trf.xlu0
    %v966 = vpop.trf.xlu0
    %v967 = vpop.trf.xlu0
    %v968 = vpop.trf.xlu0
    %v969 = vpop.trf.xlu0
    %v970 = vpop.trf.xlu0
    %v971 = vpop.trf.xlu0
    %v972 = vpop.trf.xlu0
    %v973 = vpop.trf.xlu0
    %v974 = vpop.trf.xlu0
    %v976 = vsel %vm145, %v959, 0
    %v979 = vsel %vm145, %v960, 0
    %v982 = vsel %vm145, %v961, 0
    %v985 = vsel %vm145, %v962, 0
    %987 = vmatprep.subr.mxu0 0.0
    %988 = vmatpush1.msra.mxu0 %v940
    %989 = vmatprep.subr.mxu0 0.0
    %990 = vmatpush1.msra.mxu0 0.0
    %991 = vmatprep.subr.mxu0 0.0
    %992 = vmatpush1.msra.mxu0 0.0
    %993 = vmatprep.subr.mxu0 0.0
    %994 = vmatpush1.msra.mxu0 0.0
    %995 = vmatprep.subr.mxu0 0.0
    %996 = vmatpush1.msra.mxu0 0.0
    %997 = vmatprep.subr.mxu0 0.0
    %998 = vmatpush1.msra.mxu0 0.0
    %999 = vmatprep.subr.mxu0 0.0
    %1000 = vmatpush1.msra.mxu0 0.0
    %1001 = vmatprep.subr.mxu0 0.0
    %1002 = vmatpush1.msra.mxu0 0.0
    %1003 = vmatprep.subr.mxu0 0.0
    %1004 = vmatpush1.msra.mxu0 0.0
    %1005 = vmatprep.subr.mxu0 0.0
    %1006 = vmatpush1.msra.mxu0 0.0
    %1007 = vmatprep.subr.mxu0 0.0
    %1008 = vmatpush1.msra.mxu0 0.0
    %1009 = vmatprep.subr.mxu0 0.0
    %1010 = vmatpush1.msra.mxu0 0.0
    %1011 = vmatprep.subr.mxu0 0.0
    %1012 = vmatpush1.msra.mxu0 0.0
    %1013 = vmatprep.subr.mxu0 0.0
    %1014 = vmatpush1.msra.mxu0 0.0
    %1015 = vmatprep.subr.mxu0 0.0
    %1016 = vmatpush1.msra.mxu0 0.0
    %1017 = vmatprep.subr.mxu0 0.0
    %1018 = vmatpush1.msra.mxu0 0.0
    %1019 = vmatprep.subr.mxu0 0.0
    %1020 = vmatpush1.msra.mxu0 0.0
    %1021 = vmatprep.subr.mxu0 0.0
    %1022 = vmatpush1.msra.mxu0 0.0
    %1023 = vmatprep.subr.mxu0 0.0
    %1024 = vmatpush1.msra.mxu0 0.0
    %1025 = vmatprep.subr.mxu0 0.0
    %1026 = vmatpush1.msra.mxu0 0.0
    %1027 = vmatprep.subr.mxu0 0.0
    %1028 = vmatpush1.msra.mxu0 0.0
    %1029 = vmatprep.subr.mxu0 0.0
    %1030 = vmatpush1.msra.mxu0 0.0
    %1031 = vmatprep.subr.mxu0 0.0
    %1032 = vmatpush1.msra.mxu0 0.0
    %1033 = vmatprep.subr.mxu0 0.0
    %1034 = vmatpush1.msra.mxu0 0.0
    %1035 = vmatprep.subr.mxu0 0.0
    %1036 = vmatpush1.msra.mxu0 0.0
    %1037 = vmatprep.subr.mxu0 0.0
    %1038 = vmatpush1.msra.mxu0 0.0
    %1039 = vmatprep.subr.mxu0 0.0
    %1040 = vmatpush1.msra.mxu0 0.0
    %1041 = vmatprep.subr.mxu0 0.0
    %1042 = vmatpush1.msra.mxu0 0.0
    %1043 = vmatprep.subr.mxu0 0.0
    %1044 = vmatpush1.msra.mxu0 0.0
    %1045 = vmatprep.subr.mxu0 0.0
    %1046 = vmatpush1.msra.mxu0 0.0
    %1047 = vmatprep.subr.mxu0 0.0
    %1048 = vmatpush1.msra.mxu0 0.0
    %1049 = vmatprep.subr.mxu0 0.0
    %1050 = vmatpush1.msra.mxu0 0.0
    %1051 = vmatprep.mubr.f32.mxu0 0.0
    %1052 = vmatmul.mubr.f32.gmra.mrb[0].mxu0 %v976
    %v1053 = vpop.f32.mrb[0].mxu0
    %v1054 = vadd.f32 0.0, %v1053
    %v1055 = vpop.f32.mrb[0].mxu0
    %1056 = vmatprep.mubr.f32.mxu0 0.0
    %1057 = vmatmul.mubr.f32.gmra.mrb[0].mxu0 %v979
    %v1058 = vpop.f32.mrb[0].mxu0
    %v1059 = vadd.f32 0.0, %v1058
    %v1060 = vpop.f32.mrb[0].mxu0
    %1061 = vmatprep.mubr.f32.mxu0 0.0
    %1062 = vmatmul.mubr.f32.gmra.mrb[0].mxu0 %v982
    %v1063 = vpop.f32.mrb[0].mxu0
    %v1064 = vadd.f32 0.0, %v1063
    %v1065 = vpop.f32.mrb[0].mxu0
    %1066 = vmatprep.mubr.f32.mxu0 0.0
    %1067 = vmatmul.mubr.f32.gmra.mrb[0].mxu0 %v985
    %v1068 = vpop.f32.mrb[0].mxu0
    %v1069 = vadd.f32 0.0, %v1068
    %v1070 = vpop.f32.mrb[0].mxu0
    %1071 = vdwg.mxu0
    %v1072 = vmul.f32 %v1054, %v106
    %v1073 = vmul.f32 %v1059, %v107
    %v1074 = vmul.f32 %v1064, %v108
    %v1075 = vmul.f32 %v1069, %v109
    %v1076 = vmul.f32 %v1072, 1.442695
    %v1077 = vpow.pop %v1076
    %v1078 = vmul.f32 %v1073, 1.442695
    %v1079 = vpow.pop %v1078
    %v1080 = vmul.f32 %v1074, 1.442695
    %v1081 = vpow.pop %v1080
    %v1082 = vmul.f32 %v1075, 1.442695
    %v1083 = vpow.pop %v1082
    %v1084 = vsel %vm255, %v1077, -inf
    %1085 = vmax.xlane.f32.xlu0 %v1084
    %v1086 = vpop.xlane.xlu0 %1085
    %v1087 = vsel %vm255, %v1079, -inf
    %1088 = vmax.xlane.f32.xlu0 %v1087
    %v1089 = vpop.xlane.xlu0 %1088
    %v1090 = vsel %vm255, %v1081, -inf
    %1091 = vmax.xlane.f32.xlu0 %v1090
    %v1092 = vpop.xlane.xlu0 %1091
    %v1093 = vsel %vm255, %v1083, -inf
    %1094 = vmax.xlane.f32.xlu0 %v1093
    %v1095 = vpop.xlane.xlu0 %1094
    %v1096 = vsub.f32 %v1077, %v1086
    %v1097 = vsub.f32 %v1079, %v1089
    %v1098 = vsub.f32 %v1081, %v1092
    %v1099 = vsub.f32 %v1083, %v1095
    %v1100 = vmul.f32 %v1096, 1.442695
    %v1101 = vpow.pop %v1100
    %v1102 = vmul.f32 %v1097, 1.442695
    %v1103 = vpow.pop %v1102
    %v1104 = vmul.f32 %v1098, 1.442695
    %v1105 = vpow.pop %v1104
    %v1106 = vmul.f32 %v1099, 1.442695
    %v1107 = vpow.pop %v1106
    %v1108 = vsel %vm255, %v1101, 0.0
    %1109 = vadd.xlane.f32.xlu0 %v1108
    %v1110 = vpop.xlane.xlu0 %1109
    %v1111 = vsel %vm255, %v1103, 0.0
    %1112 = vadd.xlane.f32.xlu0 %v1111
    %v1113 = vpop.xlane.xlu0 %1112
    %v1114 = vsel %vm255, %v1105, 0.0
    %1115 = vadd.xlane.f32.xlu0 %v1114
    %v1116 = vpop.xlane.xlu0 %1115
    %v1117 = vsel %vm255, %v1107, 0.0
    %1118 = vadd.xlane.f32.xlu0 %v1117
    %v1119 = vpop.xlane.xlu0 %1118
    %v1120 = vrcp.pop %v1110
    %v1121 = vrcp.pop %v1113
    %v1122 = vrcp.pop %v1116
    %v1123 = vrcp.pop %v1119
    %v1124 = vmul.f32 %v1101, %v1120
    %v1125 = vmul.f32 %v1103, %v1121
    %v1126 = vmul.f32 %v1105, %v1122
    %v1127 = vmul.f32 %v1107, %v1123
    %v1129 = vsel %vm255, %v942, 0
    %v1132 = vsel %vm255, %v1124, 0
    %v1135 = vsel %vm255, %v1125, 0
    %v1138 = vsel %vm255, %v1126, 0
    %v1141 = vsel %vm255, %v1127, 0
    %1143 = vmatprep.subr.mxu0 0.0
    %1144 = vmatpush1.xpose.msra.mxu0 %v1132
    %1145 = vmatprep.subr.mxu0 0.0
    %1146 = vmatpush1.xpose.msra.mxu0 %v1135
    %1147 = vmatprep.subr.mxu0 0.0
    %1148 = vmatpush1.xpose.msra.mxu0 %v1138
    %1149 = vmatprep.subr.mxu0 0.0
    %1150 = vmatpush1.xpose.msra.mxu0 %v1141
    %1151 = vmatprep.subr.mxu0 0.0
    %1152 = vmatpush1.xpose.msra.mxu0 0.0
    %1153 = vmatprep.subr.mxu0 0.0
    %1154 = vmatpush1.xpose.msra.mxu0 0.0
    %1155 = vmatprep.subr.mxu0 0.0
    %1156 = vmatpush1.xpose.msra.mxu0 0.0
    %1157 = vmatprep.subr.mxu0 0.0
    %1158 = vmatpush1.xpose.msra.mxu0 0.0
    %1159 = vmatprep.subr.mxu0 0.0
    %1160 = vmatpush1.xpose.msra.mxu0 0.0
    %1161 = vmatprep.subr.mxu0 0.0
    %1162 = vmatpush1.xpose.msra.mxu0 0.0
    %1163 = vmatprep.subr.mxu0 0.0
    %1164 = vmatpush1.xpose.msra.mxu0 0.0
    %1165 = vmatprep.subr.mxu0 0.0
    %1166 = vmatpush1.xpose.msra.mxu0 0.0
    %1167 = vmatprep.subr.mxu0 0.0
    %1168 = vmatpush1.xpose.msra.mxu0 0.0
    %1169 = vmatprep.subr.mxu0 0.0
    %1170 = vmatpush1.xpose.msra.mxu0 0.0
    %1171 = vmatprep.subr.mxu0 0.0
    %1172 = vmatpush1.xpose.msra.mxu0 0.0
    %1173 = vmatprep.subr.mxu0 0.0
    %1174 = vmatpush1.xpose.msra.mxu0 0.0
    %1175 = vmatprep.subr.mxu0 0.0
    %1176 = vmatpush1.xpose.msra.mxu0 0.0
    %1177 = vmatprep.subr.mxu0 0.0
    %1178 = vmatpush1.xpose.msra.mxu0 0.0
    %1179 = vmatprep.subr.mxu0 0.0
    %1180 = vmatpush1.xpose.msra.mxu0 0.0
    %1181 = vmatprep.subr.mxu0 0.0
    %1182 = vmatpush1.xpose.msra.mxu0 0.0
    %1183 = vmatprep.subr.mxu0 0.0
    %1184 = vmatpush1.xpose.msra.mxu0 0.0
    %1185 = vmatprep.subr.mxu0 0.0
    %1186 = vmatpush1.xpose.msra.mxu0 0.0
    %1187 = vmatprep.subr.mxu0 0.0
    %1188 = vmatpush1.xpose.msra.mxu0 0.0
    %1189 = vmatprep.subr.mxu0 0.0
    %1190 = vmatpush1.xpose.msra.mxu0 0.0
    %1191 = vmatprep.subr.mxu0 0.0
    %1192 = vmatpush1.xpose.msra.mxu0 0.0
    %1193 = vmatprep.subr.mxu0 0.0
    %1194 = vmatpush1.xpose.msra.mxu0 0.0
    %1195 = vmatprep.subr.mxu0 0.0
    %1196 = vmatpush1.xpose.msra.mxu0 0.0
    %1197 = vmatprep.subr.mxu0 0.0
    %1198 = vmatpush1.xpose.msra.mxu0 0.0
    %1199 = vmatprep.subr.mxu0 0.0
    %1200 = vmatpush1.xpose.msra.mxu0 0.0
    %1201 = vmatprep.subr.mxu0 0.0
    %1202 = vmatpush1.xpose.msra.mxu0 0.0
    %1203 = vmatprep.subr.mxu0 0.0
    %1204 = vmatpush1.xpose.msra.mxu0 0.0
    %1205 = vmatprep.subr.mxu0 0.0
    %1206 = vmatpush1.xpose.msra.mxu0 0.0
    %1207 = vmatprep.mubr.f32.mxu0 0.0
    %1208 = vmatmul.mubr.f32.gmra.mrb[0].mxu0 %v1129
    %v1209 = vpop.f32.mrb[0].mxu0
    %v1210 = vadd.f32 0.0, %v1209
    %v1211 = vpop.f32.mrb[0].mxu0
    %1212 = vdwg.mxu0
    %v1213 = vld [vmem:[#allocation8] sm:$0xff]
    %v1214 = vld [vmem:[#allocation8 + $0x8] sm:$0xff]
    %v1215 = vld [vmem:[#allocation8 + $0x10] sm:$0xff]
    %v1216 = vld [vmem:[#allocation8 + $0x18] sm:$0xff]
    %v1217 = vld [vmem:[%s4] sm:$0x1]
    %v1219 = vlaneseq
    %v1220 = vshrl.u32 %v1219, 7
    %v1221 = vsub.s32 0, %v1220
    %v1222 = vrot.slane %v1217, %v1221
    %v1225 = vsel %vm255, %v382, 0
    %v1228 = vsel %vm255, %v658, 0
    %v1231 = vsel %vm255, %v934, 0
    %v1234 = vsel %vm255, %v1210, 0
    %1236 = vmatprep.subr.mxu0 0.0
    %1237 = vmatpush1.msra.mxu0 %v1213
    %1238 = vmatprep.subr.mxu0 0.0
    %1239 = vmatpush1.msra.mxu0 %v1214
    %1240 = vmatprep.subr.mxu0 0.0
    %1241 = vmatpush1.msra.mxu0 %v1215
    %1242 = vmatprep.subr.mxu0 0.0
    %1243 = vmatpush1.msra.mxu0 %v1216
    %1244 = vmatprep.subr.mxu0 0.0
    %1245 = vmatpush1.msra.mxu0 0.0
    %1246 = vmatprep.subr.mxu0 0.0
    %1247 = vmatpush1.msra.mxu0 0.0
    %1248 = vmatprep.subr.mxu0 0.0
    %1249 = vmatpush1.msra.mxu0 0.0
    %1250 = vmatprep.subr.mxu0 0.0
    %1251 = vmatpush1.msra.mxu0 0.0
    %1252 = vmatprep.subr.mxu0 0.0
    %1253 = vmatpush1.msra.mxu0 0.0
    %1254 = vmatprep.subr.mxu0 0.0
    %1255 = vmatpush1.msra.mxu0 0.0
    %1256 = vmatprep.subr.mxu0 0.0
    %1257 = vmatpush1.msra.mxu0 0.0
    %1258 = vmatprep.subr.mxu0 0.0
    %1259 = vmatpush1.msra.mxu0 0.0
    %1260 = vmatprep.subr.mxu0 0.0
    %1261 = vmatpush1.msra.mxu0 0.0
    %1262 = vmatprep.subr.mxu0 0.0
    %1263 = vmatpush1.msra.mxu0 0.0
    %1264 = vmatprep.subr.mxu0 0.0
    %1265 = vmatpush1.msra.mxu0 0.0
    %1266 = vmatprep.subr.mxu0 0.0
    %1267 = vmatpush1.msra.mxu0 0.0
    %1268 = vmatprep.subr.mxu0 0.0
    %1269 = vmatpush1.msra.mxu0 0.0
    %1270 = vmatprep.subr.mxu0 0.0
    %1271 = vmatpush1.msra.mxu0 0.0
    %1272 = vmatprep.subr.mxu0 0.0
    %1273 = vmatpush1.msra.mxu0 0.0
    %1274 = vmatprep.subr.mxu0 0.0
    %1275 = vmatpush1.msra.mxu0 0.0
    %1276 = vmatprep.subr.mxu0 0.0
    %1277 = vmatpush1.msra.mxu0 0.0
    %1278 = vmatprep.subr.mxu0 0.0
    %1279 = vmatpush1.msra.mxu0 0.0
    %1280 = vmatprep.subr.mxu0 0.0
    %1281 = vmatpush1.msra.mxu0 0.0
    %1282 = vmatprep.subr.mxu0 0.0
    %1283 = vmatpush1.msra.mxu0 0.0
    %1284 = vmatprep.subr.mxu0 0.0
    %1285 = vmatpush1.msra.mxu0 0.0
    %1286 = vmatprep.subr.mxu0 0.0
    %1287 = vmatpush1.msra.mxu0 0.0
    %1288 = vmatprep.subr.mxu0 0.0
    %1289 = vmatpush1.msra.mxu0 0.0
    %1290 = vmatprep.subr.mxu0 0.0
    %1291 = vmatpush1.msra.mxu0 0.0
    %1292 = vmatprep.subr.mxu0 0.0
    %1293 = vmatpush1.msra.mxu0 0.0
    %1294 = vmatprep.subr.mxu0 0.0
    %1295 = vmatpush1.msra.mxu0 0.0
    %1296 = vmatprep.subr.mxu0 0.0
    %1297 = vmatpush1.msra.mxu0 0.0
    %1298 = vmatprep.subr.mxu0 0.0
    %1299 = vmatpush1.msra.mxu0 0.0
    %1300 = vmatprep.mubr.f32.mxu0 0.0
    %1301 = vmatmul.mubr.f32.gmra.mrb[0].mxu0 %v1225
    %v1302 = vpop.f32.mrb[0].mxu0
    %v1303 = vadd.f32 %v1222, %v1302
    %v1304 = vpop.f32.mrb[0].mxu0
    %1305 = vmatprep.mubr.f32.mxu0 0.0
    %1306 = vmatmul.mubr.f32.gmra.mrb[0].mxu0 %v1228
    %v1307 = vpop.f32.mrb[0].mxu0
    %v1308 = vadd.f32 %v1222, %v1307
    %v1309 = vpop.f32.mrb[0].mxu0
    %1310 = vmatprep.mubr.f32.mxu0 0.0
    %1311 = vmatmul.mubr.f32.gmra.mrb[0].mxu0 %v1231
    %v1312 = vpop.f32.mrb[0].mxu0
    %v1313 = vadd.f32 %v1222, %v1312
    %v1314 = vpop.f32.mrb[0].mxu0
    %1315 = vmatprep.mubr.f32.mxu0 0.0
    %1316 = vmatmul.mubr.f32.gmra.mrb[0].mxu0 %v1234
    %v1317 = vpop.f32.mrb[0].mxu0
    %v1318 = vadd.f32 %v1222, %v1317
    %v1319 = vpop.f32.mrb[0].mxu0
    %1320 = vdwg.mxu0
    %v1321 = vmax.f32 %v1303, 0.0
    %v1322 = vmax.f32 %v1308, 0.0
    %v1323 = vmax.f32 %v1313, 0.0
    %v1324 = vmax.f32 %v1318, 0.0
    %v1325 = vld [vmem:[#allocation10] sm:$0xff]
    %v1326 = vld [vmem:[#allocation10 + $0x8] sm:$0xff]
    %v1327 = vld [vmem:[#allocation10 + $0x10] sm:$0xff]
    %v1328 = vld [vmem:[#allocation10 + $0x18] sm:$0xff]
    %v1329 = vld [vmem:[#allocation10 + $0x20] sm:$0xff]
    %v1330 = vld [vmem:[#allocation10 + $0x28] sm:$0xff]
    %v1331 = vld [vmem:[#allocation10 + $0x30] sm:$0xff]
    %v1332 = vld [vmem:[#allocation10 + $0x38] sm:$0xff]
    %v1333 = vld [vmem:[#allocation10 + $0x40] sm:$0xff]
    %v1334 = vld [vmem:[#allocation10 + $0x48] sm:$0xff]
    %v1335 = vld [vmem:[#allocation10 + $0x50] sm:$0xff]
    %v1336 = vld [vmem:[#allocation10 + $0x58] sm:$0xff]
    %v1337 = vld [vmem:[#allocation10 + $0x60] sm:$0xff]
    %v1338 = vld [vmem:[#allocation10 + $0x68] sm:$0xff]
    %v1339 = vld [vmem:[#allocation10 + $0x70] sm:$0xff]
    %v1340 = vld [vmem:[#allocation10 + $0x78] sm:$0xff]
    %v1341 = vld [vmem:[%s6] sm:$0x1]
    %v1343 = vlaneseq
    %v1344 = vshrl.u32 %v1343, 7
    %v1345 = vsub.s32 0, %v1344
    %v1346 = vrot.slane %v1341, %v1345
    %1348 = vmatprep.subr.mxu0 0.0
    %1349 = vmatpush1.msra.mxu0 %v1325
    %1350 = vmatprep.subr.mxu0 0.0
    %1351 = vmatpush1.msra.mxu0 %v1326
    %1352 = vmatprep.subr.mxu0 0.0
    %1353 = vmatpush1.msra.mxu0 %v1327
    %1354 = vmatprep.subr.mxu0 0.0
    %1355 = vmatpush1.msra.mxu0 %v1328
    %1356 = vmatprep.subr.mxu0 0.0
    %1357 = vmatpush1.msra.mxu0 %v1329
    %1358 = vmatprep.subr.mxu0 0.0
    %1359 = vmatpush1.msra.mxu0 %v1330
    %1360 = vmatprep.subr.mxu0 0.0
    %1361 = vmatpush1.msra.mxu0 %v1331
    %1362 = vmatprep.subr.mxu0 0.0
    %1363 = vmatpush1.msra.mxu0 %v1332
    %1364 = vmatprep.subr.mxu0 0.0
    %1365 = vmatpush1.msra.mxu0 %v1333
    %1366 = vmatprep.subr.mxu0 0.0
    %1367 = vmatpush1.msra.mxu0 %v1334
    %1368 = vmatprep.subr.mxu0 0.0
    %1369 = vmatpush1.msra.mxu0 %v1335
    %1370 = vmatprep.subr.mxu0 0.0
    %1371 = vmatpush1.msra.mxu0 %v1336
    %1372 = vmatprep.subr.mxu0 0.0
    %1373 = vmatpush1.msra.mxu0 %v1337
    %1374 = vmatprep.subr.mxu0 0.0
    %1375 = vmatpush1.msra.mxu0 %v1338
    %1376 = vmatprep.subr.mxu0 0.0
    %1377 = vmatpush1.msra.mxu0 %v1339
    %1378 = vmatprep.subr.mxu0 0.0
    %1379 = vmatpush1.msra.mxu0 %v1340
    %1380 = vmatprep.subr.mxu0 0.0
    %1381 = vmatpush1.msra.mxu0 0.0
    %1382 = vmatprep.subr.mxu0 0.0
    %1383 = vmatpush1.msra.mxu0 0.0
    %1384 = vmatprep.subr.mxu0 0.0
    %1385 = vmatpush1.msra.mxu0 0.0
    %1386 = vmatprep.subr.mxu0 0.0
    %1387 = vmatpush1.msra.mxu0 0.0
    %1388 = vmatprep.subr.mxu0 0.0
    %1389 = vmatpush1.msra.mxu0 0.0
    %1390 = vmatprep.subr.mxu0 0.0
    %1391 = vmatpush1.msra.mxu0 0.0
    %1392 = vmatprep.subr.mxu0 0.0
    %1393 = vmatpush1.msra.mxu0 0.0
    %1394 = vmatprep.subr.mxu0 0.0
    %1395 = vmatpush1.msra.mxu0 0.0
    %1396 = vmatprep.subr.mxu0 0.0
    %1397 = vmatpush1.msra.mxu0 0.0
    %1398 = vmatprep.subr.mxu0 0.0
    %1399 = vmatpush1.msra.mxu0 0.0
    %1400 = vmatprep.subr.mxu0 0.0
    %1401 = vmatpush1.msra.mxu0 0.0
    %1402 = vmatprep.subr.mxu0 0.0
    %1403 = vmatpush1.msra.mxu0 0.0
    %1404 = vmatprep.subr.mxu0 0.0
    %1405 = vmatpush1.msra.mxu0 0.0
    %1406 = vmatprep.subr.mxu0 0.0
    %1407 = vmatpush1.msra.mxu0 0.0
    %1408 = vmatprep.subr.mxu0 0.0
    %1409 = vmatpush1.msra.mxu0 0.0
    %1410 = vmatprep.subr.mxu0 0.0
    %1411 = vmatpush1.msra.mxu0 0.0
    %1412 = vmatprep.mubr.f32.mxu0 0.0
    %1413 = vmatmul.mubr.f32.gmra.mrb[0].mxu0 %v1321
    %v1414 = vpop.f32.mrb[0].mxu0
    %v1415 = vadd.f32 %v1346, %v1414
    %v1416 = vpop.f32.mrb[0].mxu0
    %1417 = vmatprep.mubr.f32.mxu0 0.0
    %1418 = vmatmul.mubr.f32.gmra.mrb[0].mxu0 %v1322
    %v1419 = vpop.f32.mrb[0].mxu0
    %v1420 = vadd.f32 %v1346, %v1419
    %v1421 = vpop.f32.mrb[0].mxu0
    %1422 = vmatprep.mubr.f32.mxu0 0.0
    %1423 = vmatmul.mubr.f32.gmra.mrb[0].mxu0 %v1323
    %v1424 = vpop.f32.mrb[0].mxu0
    %v1425 = vadd.f32 %v1346, %v1424
    %v1426 = vpop.f32.mrb[0].mxu0
    %1427 = vmatprep.mubr.f32.mxu0 0.0
    %1428 = vmatmul.mubr.f32.gmra.mrb[0].mxu0 %v1324
    %v1429 = vpop.f32.mrb[0].mxu0
    %v1430 = vadd.f32 %v1346, %v1429
    %v1431 = vpop.f32.mrb[0].mxu0
    %1432 = vdwg.mxu0
    %1433 = vst [vmem:[#allocation11] sm:$0xff] %v1415
    %1434 = vst [vmem:[#allocation11 + $0x8] sm:$0xff] %v1420
    %1435 = vst [vmem:[#allocation11 + $0x10] sm:$0xff] %v1425
    %1436 = vst [vmem:[#allocation11 + $0x18] sm:$0xff] %v1430
    // Predicated region
    $region50: #{tpu_custom_call.1} parent=1 // pred_check
      _
    $region51: #{tpu_custom_call.1} parent=1 // pred_check_branch
      %1438 = sbr.rel (0) target = $region53
    $region52: #{tpu_custom_call.1} parent=1 // pred_region
      %s1440 = ssub.s32 512, 512
      %1441 = vsyncadd [#allocation4], %s1440
      %s1442 = sshll.u32 [#allocation11], 4
      %s1443 = int_to_ptr.vmem [resolvable:$true] %s1442
      %1448 = dma.vmem_to_hbm [thread:$0]  %s1443, 512, %s7, [#allocation4], 128, 128, 8
    $region53: #{tpu_custom_call.1} parent=1 // pred_fallthru
      _
    // Predicated region
    $region54: #{tpu_custom_call.1} parent=1 // pred_check
      _
    $region55: #{tpu_custom_call.1} parent=1 // pred_check_branch
      %1450 = sbr.rel (0) target = $region57
    $region56: #{tpu_custom_call.1} parent=1 // pred_region
      %1451 = dma.done [#allocation4], 512
    $region57: #{tpu_custom_call.1} parent=1 // pred_fallthru
      _
    %1452 = vsyncpa [#allocation3], 1
    %1453 = vsyncpa [#allocation6], 1
    %1454 = vsyncpa [#allocation9], 1
    %1455 = vsyncpa [#allocation4], 1

</llo_original>
